<compile_context>
chip_gen: v7x
topology: tpu7x:2x2x1
jax: 0.10.0
libtpu: 0.0.40
codegen_flags: <defaults>
</compile_context>

<pallas_src>
import functools

import numpy as np

import jax
import jax.numpy as jnp
from jax.experimental import pallas as pl
from jax.experimental.pallas import tpu as pltpu


# ---------------------------------------------------------------------------
# Fused Pallas kernel: NB images per grid step.
# Layout: rows (h) on sublanes, (w, c) flattened on lanes -> 128-wide stores.
# ---------------------------------------------------------------------------
def _fused_downsample_kernel(NB, H, W, Cin, Cout, pack,
                             x_ref, B1_ref, b1_ref, B2_ref, b2_ref,
                             R_ref, Se_ref,
                             down_ref, pool_ref,
                             xp_scr, yp_scr):
    f32 = jnp.float32
    S = H + 2                      # per-image padded row stride in the slab
    M = NB * S - 2                 # rows produced by each banded matmul
    Hh, Wh = H // 2, W // 2
    Hh_out = Hh // pack            # packed pool rows stored per image

    # ---- stage x into the per-image zero-row-padded slab -------------------
    # Halo rows are (re)written every step: scratch is per-core on dual-TC
    # chips, so a pl.program_id(0)==0-guarded one-time init would leave the
    # second core's scratch uninitialised under "parallel" semantics.
    zx = jnp.zeros((1, W * Cin), f32)
    for i in range(NB):
        base = i * S
        xp_scr[base:base + 1, :] = zx
        xp_scr[base + 1:base + 1 + H, :] = x_ref[i]
        xp_scr[base + H + 1:base + H + 2, :] = zx

    # ---- conv1 (3x3, pad=1) + ReLU: 3 banded matmuls, tree-summed ----------
    d0 = jnp.dot(xp_scr[0:M, :],     B1_ref[0], preferred_element_type=f32)
    d1 = jnp.dot(xp_scr[1:M + 1, :], B1_ref[1], preferred_element_type=f32)
    d2 = jnp.dot(xp_scr[2:M + 2, :], B1_ref[2], preferred_element_type=f32)
    y1 = jnp.maximum((d0 + d1) + (d2 + b1_ref[...]), 0.0)       # (M, W*Cout)

    # ---- stage conv1 output; inter-image halo rows forced to zero ----------
    zy = jnp.zeros((1, W * Cout), f32)
    yp_scr[0:1, :] = zy
    if NB > 1:
        row = jax.lax.broadcasted_iota(jnp.int32, (M, 1), 0)
        y1 = jnp.where((row % S) < H, y1, 0.0)
    yp_scr[1:M + 1, :] = y1
    yp_scr[M + 1:M + 2, :] = zy

    # ---- conv2 (3x3, pad=1) + ReLU ------------------------------------------
    e0 = jnp.dot(yp_scr[0:M, :],     B2_ref[0], preferred_element_type=f32)
    e1 = jnp.dot(yp_scr[1:M + 1, :], B2_ref[1], preferred_element_type=f32)
    e2 = jnp.dot(yp_scr[2:M + 2, :], B2_ref[2], preferred_element_type=f32)
    y2 = jnp.maximum((e0 + e1) + (e2 + b2_ref[...]), 0.0)       # (M, W*Cout)

    # ---- lane-dense `down` store (W*Cout lanes per row) ---------------------
    for i in range(NB):
        down_ref[i] = y2[i * S:i * S + H, :]

    # ---- 2x2 max-pool --------------------------------------------------------
    # Pairwise maxes on the VPU via shifted value slices (no selection matmuls
    # for the max); compaction + row-pair lane packing as tiny 0/1 matmuls so
    # the pool store is pack*Wh*Cout (>=128) lanes wide.
    lm = jnp.maximum(y2[:, :(W - 1) * Cout], y2[:, Cout:])      # col-pair max
    rm = jnp.maximum(lm[:M - 1, :], lm[1:, :])                  # row-pair max
    parts = []
    for k in range(pack):
        rows = jnp.dot(R_ref[k], rm, preferred_element_type=f32)
        parts.append(jnp.dot(rows, Se_ref[k], preferred_element_type=f32))
    packed = parts[0]
    for t in parts[1:]:
        packed = packed + t                        # (NB*Hh_out, pack*Wh*Cout)
    for i in range(NB):
        pool_ref[i] = packed[i * Hh_out:(i + 1) * Hh_out, :]


# ---------------------------------------------------------------------------
# Trace-time weight folding / selector construction (tiny)
# ---------------------------------------------------------------------------
def _banded_weight(w_oihw, W):
    """Fold a (Cout, Cin, 3, 3) conv weight into 3 lane-banded matrices B s.t.
    out_slab = sum_dy  xpad_rows[dy:dy+M, :] @ B[dy]
    implements the 3x3 conv with padding=1 on (H, W*Cin) slabs.
    B[dy, w'*Cin + ci, w*Cout + co] = w[co, ci, dy, w'-w+1] if |w'-w| <= 1 else 0.
    """
    w_t = jnp.transpose(w_oihw, (2, 3, 1, 0))        # (3, 3, Cin, Cout)
    Cin, Cout = w_t.shape[2], w_t.shape[3]
    wp = jnp.arange(W)[:, None]                      # source column w'
    wq = jnp.arange(W)[None, :]                      # output column w
    dx = wp - wq + 1                                 # (W, W)
    valid = ((dx >= 0) & (dx <= 2)).astype(w_oihw.dtype)
    dx_c = jnp.clip(dx, 0, 2)
    band = w_t[:, dx_c]                              # (3, W, W, Cin, Cout)
    band = band * valid[None, :, :, None, None]
    return band.transpose(0, 1, 3, 2, 4).reshape(3, W * Cin, W * Cout)


def _pool_matrices(NB, H, W, Cout, pack):
    """0/1 row-compaction (R) and lane-compaction+placement (Se) matrices for
    the packed 2x2 max-pool output.  Pure constants -> built with numpy."""
    S = H + 2
    Hh, Wh = H // 2, W // 2
    Hh_out = Hh // pack
    Krm = NB * S - 3                                 # rows of the row-pair-max slab
    R = np.zeros((pack, NB * Hh_out, Krm), np.float32)
    Se = np.zeros((pack, (W - 1) * Cout, pack * Wh * Cout), np.float32)
    for k in range(pack):
        for i in range(NB):
            for j in range(Hh_out):
                R[k, i * Hh_out + j, i * S + 2 * (pack * j + k)] = 1.0
        for wp in range(Wh):
            for c in range(Cout):
                Se[k, 2 * wp * Cout + c, k * Wh * Cout + wp * Cout + c] = 1.0
    return jnp.asarray(R), jnp.asarray(Se)


def _choose_images_per_block(N, H):
    """Images per grid step: raise the banded-matmul M (= NB*(H+2)-2) toward
    the MXU height while keeping >=2 grid steps so both of v7x's TensorCores
    get work, and preferring an exact divisor of N (no padded-batch waste)."""
    target_rows = 256
    cap = max(1, -(-target_rows // (H + 2)))
    if N >= 2:
        cap = min(cap, max(1, N // 2))
    cap = min(cap, N)
    for nb in range(cap, 0, -1):
        if N % nb == 0:
            if nb * 2 >= cap:
                return nb
            break
    return cap


# ---------------------------------------------------------------------------
# Public wrapper (PyTorch NCHW in / NCHW out)
# ---------------------------------------------------------------------------
@jax.jit
def downsample_forward(x_nchw, w1, b1, w2, b2):
    N, Cin, H, W = x_nchw.shape
    Cout = w1.shape[0]
    assert H % 2 == 0 and W % 2 == 0, "MaxPool2d(2,2) path assumes even H, W"
    f32 = jnp.float32
    Hh, Wh = H // 2, W // 2

    # pack 2 pool rows per stored row when that makes the pool store >=128 lanes
    pack = 2 if (Wh * Cout < 128 and Hh % 2 == 0) else 1
    Hh_out = Hh // pack

    NB = _choose_images_per_block(N, H)
    Np = -(-N // NB) * NB                        # pad batch to a multiple of NB
    S = H + 2

    x = x_nchw.astype(f32)
    if Np != N:
        x = jnp.pad(x, ((0, Np - N), (0, 0), (0, 0), (0, 0)))
    # tiny layout plumbing: NCHW -> (Np, H, W*Cin) lane-dense slabs
    x_slab = jnp.transpose(x, (0, 2, 3, 1)).reshape(Np, H, W * Cin)

    # fold conv weights / pool matrices once at trace time (KB-sized)
    B1 = _banded_weight(w1.astype(f32), W)                     # (3, W*Cin,  W*Cout)
    B2 = _banded_weight(w2.astype(f32), W)                     # (3, W*Cout, W*Cout)
    b1row = jnp.tile(b1.astype(f32), W).reshape(1, W * Cout)   # [w*Cout+co] = b1[co]
    b2row = jnp.tile(b2.astype(f32), W).reshape(1, W * Cout)
    R, Se = _pool_matrices(NB, H, W, Cout, pack)

    kernel = functools.partial(_fused_downsample_kernel, NB, H, W, Cin, Cout, pack)

    in_specs = [
        pl.BlockSpec((NB, H, W * Cin), lambda n: (n, 0, 0)),            # x slab block
        pl.BlockSpec((3, W * Cin, W * Cout), lambda n: (0, 0, 0)),      # B1 (grid-invariant)
        pl.BlockSpec((1, W * Cout), lambda n: (0, 0)),                  # b1 row
        pl.BlockSpec((3, W * Cout, W * Cout), lambda n: (0, 0, 0)),     # B2 (grid-invariant)
        pl.BlockSpec((1, W * Cout), lambda n: (0, 0)),                  # b2 row
        pl.BlockSpec(tuple(R.shape), lambda n: (0, 0, 0)),              # pool row selectors
        pl.BlockSpec(tuple(Se.shape), lambda n: (0, 0, 0)),             # pool lane selectors
    ]
    out_specs = [
        pl.BlockSpec((NB, H, W * Cout), lambda n: (n, 0, 0)),           # down slab block
        pl.BlockSpec((NB, Hh_out, pack * Wh * Cout), lambda n: (n, 0, 0)),  # packed pool block
    ]

    down_slab, pool_slab = pl.pallas_call(
        kernel,
        out_shape=(jax.ShapeDtypeStruct((Np, H, W * Cout), f32),
                   jax.ShapeDtypeStruct((Np, Hh_out, pack * Wh * Cout), f32)),
        grid_spec=pltpu.PrefetchScalarGridSpec(
            num_scalar_prefetch=0,
            grid=(Np // NB,),
            in_specs=in_specs,
            out_specs=out_specs,
            scratch_shapes=[
                pltpu.VMEM((NB * S, W * Cin), f32),    # row-padded x slab
                pltpu.VMEM((NB * S, W * Cout), f32),   # row-padded conv1 output
            ],
        ),
        compiler_params=pltpu.CompilerParams(
            dimension_semantics=("parallel",),
            vmem_limit_bytes=32 * 1024 * 1024),
    )(x_slab, B1, b1row, B2, b2row, R, Se)

    # tiny edge transposes back to the PyTorch NCHW interface
    down = jnp.transpose(down_slab[:N].reshape(N, H, W, Cout), (0, 3, 1, 2))
    p = jnp.transpose(
        pool_slab[:N].reshape(N, Hh_out, pack, Wh, Cout).reshape(N, Hh, Wh, Cout),
        (0, 3, 1, 2))
    return down, p


# ---------------------------------------------------------------------------
# Pure-JAX reference (for correctness check)
# ---------------------------------------------------------------------------
def _ref_forward(x, w1, b1, w2, b2):
    dn = jax.lax.conv_dimension_numbers(x.shape, w1.shape,
                                        ("NCHW", "OIHW", "NCHW"))
    y = jax.lax.conv_general_dilated(x, w1, (1, 1), ((1, 1), (1, 1)),
                                     dimension_numbers=dn)
    y = jnp.maximum(y + b1[None, :, None, None], 0.0)
    y = jax.lax.conv_general_dilated(y, w2, (1, 1), ((1, 1), (1, 1)),
                                     dimension_numbers=dn)
    down = jnp.maximum(y + b2[None, :, None, None], 0.0)
    p = jax.lax.reduce_window(down, -jnp.inf, jax.lax.max,
                              (1, 1, 2, 2), (1, 1, 2, 2), "VALID")
    return down, p


# ---------------------------------------------------------------------------
if __name__ == "__main__":
    N, Cin, Cout, H, W = 2, 4, 8, 16, 16

    key = jax.random.PRNGKey(0)
    k1, k2, k3, k4, kx = jax.random.split(key, 5)

    # Deterministic synthetic parameters (PyTorch OIHW conv weight layout).
    w1 = 0.1 * jax.random.normal(k1, (Cout, Cin, 3, 3), jnp.float32)
    b1 = 0.1 * jax.random.normal(k2, (Cout,), jnp.float32)
    w2 = 0.1 * jax.random.normal(k3, (Cout, Cout, 3, 3), jnp.float32)
    b2 = 0.1 * jax.random.normal(k4, (Cout,), jnp.float32)

    x = jax.random.normal(kx, (N, Cin, H, W), jnp.float32)   # NCHW like PyTorch

    down, p = downsample_forward(x, w1, b1, w2, b2)
    jax.block_until_ready((down, p))

    # sanity check vs pure-JAX reference
    down_ref, p_ref = _ref_forward(x, w1, b1, w2, b2)
    assert down.shape == (N, Cout, H, W)
    assert p.shape == (N, Cout, H // 2, W // 2)
    assert jnp.allclose(down, down_ref, atol=1e-4, rtol=1e-4)
    assert jnp.allclose(p, p_ref, atol=1e-4, rtol=1e-4)

    print("KERNEL_OK")
</pallas_src>

<mosaic_0001>
module attributes {stable_mosaic.version = 11 : i64} {
  func.func @_fused_downsample_kernel(%arg0: i32, %arg1: memref<1x16x64xf32, #tpu.memory_space<vmem>>, %arg2: memref<3x64x128xf32, #tpu.memory_space<vmem>>, %arg3: memref<1x128xf32, #tpu.memory_space<vmem>>, %arg4: memref<3x128x128xf32, #tpu.memory_space<vmem>>, %arg5: memref<1x128xf32, #tpu.memory_space<vmem>>, %arg6: memref<2x4x15xf32, #tpu.memory_space<vmem>>, %arg7: memref<2x120x128xf32, #tpu.memory_space<vmem>>, %arg8: memref<1x16x128xf32, #tpu.memory_space<vmem>>, %arg9: memref<1x4x128xf32, #tpu.memory_space<vmem>>, %arg10: memref<18x64xf32, #tpu.memory_space<vmem>>, %arg11: memref<18x128xf32, #tpu.memory_space<vmem>>) attributes {dimension_semantics = [#tpu.dimension_semantics<parallel>], iteration_bounds = array<i64: 2>, scalar_prefetch = 0 : i64, scratch_operands = 2 : i64, tpu.core_type = #tpu.core_type<tc>, window_params = [{transform_indices = @transform_0, window_bounds = array<i64: 1, 16, 64>}, {pipeline_mode = #tpu.pipeline_mode<synchronous>, transform_indices = @transform_1, window_bounds = array<i64: 3, 64, 128>}, {pipeline_mode = #tpu.pipeline_mode<synchronous>, transform_indices = @transform_2, window_bounds = array<i64: 1, 128>}, {pipeline_mode = #tpu.pipeline_mode<synchronous>, transform_indices = @transform_3, window_bounds = array<i64: 3, 128, 128>}, {pipeline_mode = #tpu.pipeline_mode<synchronous>, transform_indices = @transform_4, window_bounds = array<i64: 1, 128>}, {pipeline_mode = #tpu.pipeline_mode<synchronous>, transform_indices = @transform_5, window_bounds = array<i64: 2, 4, 15>}, {pipeline_mode = #tpu.pipeline_mode<synchronous>, transform_indices = @transform_6, window_bounds = array<i64: 2, 120, 128>}, {transform_indices = @transform_7, window_bounds = array<i64: 1, 16, 128>}, {transform_indices = @transform_8, window_bounds = array<i64: 1, 4, 128>}]} {
    %cst = arith.constant 0.000000e+00 : f32
    %0 = vector.broadcast %cst : f32 to vector<1x64xf32>
    %c0 = arith.constant 0 : index
    %c0_0 = arith.constant 0 : index
    %1 = vector.load %arg10[%c0, %c0_0] : memref<18x64xf32, #tpu.memory_space<vmem>>, vector<1x64xf32>
    tpu.vector_store %arg10[%c0, %c0_0], %0 {strides = array<i32>} : memref<18x64xf32, #tpu.memory_space<vmem>>, vector<1x64xf32>,
    %c0_1 = arith.constant 0 : index
    %c0_2 = arith.constant 0 : index
    %c0_3 = arith.constant 0 : index
    %2 = vector.load %arg1[%c0_1, %c0_2, %c0_3] : memref<1x16x64xf32, #tpu.memory_space<vmem>>, vector<1x16x64xf32>
    %3 = vector.shape_cast %2 : vector<1x16x64xf32> to vector<16x64xf32>
    %c1 = arith.constant 1 : index
    %c0_4 = arith.constant 0 : index
    %4 = vector.load %arg10[%c1, %c0_4] : memref<18x64xf32, #tpu.memory_space<vmem>>, vector<16x64xf32>
    tpu.vector_store %arg10[%c1, %c0_4], %3 {strides = array<i32>} : memref<18x64xf32, #tpu.memory_space<vmem>>, vector<16x64xf32>,
    %c17 = arith.constant 17 : index
    %c0_5 = arith.constant 0 : index
    %5 = vector.load %arg10[%c17, %c0_5] : memref<18x64xf32, #tpu.memory_space<vmem>>, vector<1x64xf32>
    tpu.vector_store %arg10[%c17, %c0_5], %0 {strides = array<i32>} : memref<18x64xf32, #tpu.memory_space<vmem>>, vector<1x64xf32>,
    %c0_6 = arith.constant 0 : index
    %c0_7 = arith.constant 0 : index
    %6 = vector.load %arg10[%c0_6, %c0_7] : memref<18x64xf32, #tpu.memory_space<vmem>>, vector<16x64xf32>
    %c0_8 = arith.constant 0 : index
    %c0_9 = arith.constant 0 : index
    %c0_10 = arith.constant 0 : index
    %7 = vector.load %arg2[%c0_8, %c0_9, %c0_10] : memref<3x64x128xf32, #tpu.memory_space<vmem>>, vector<1x64x128xf32>
    %8 = vector.shape_cast %7 : vector<1x64x128xf32> to vector<64x128xf32>
    %cst_11 = arith.constant dense<0.000000e+00> : vector<16x128xf32>
    %9 = tpu.matmul %6, %8, %cst_11 {dimension_numbers = #tpu.dot_dimension_numbers<[1], [0], [0], [1], [0, 0, 1, 1], [], []>} : vector<16x64xf32>, vector<64x128xf32>, vector<16x128xf32> -> vector<16x128xf32>
    %c1_12 = arith.constant 1 : index
    %c0_13 = arith.constant 0 : index
    %10 = vector.load %arg10[%c1_12, %c0_13] : memref<18x64xf32, #tpu.memory_space<vmem>>, vector<16x64xf32>
    %c1_14 = arith.constant 1 : index
    %c0_15 = arith.constant 0 : index
    %c0_16 = arith.constant 0 : index
    %11 = vector.load %arg2[%c1_14, %c0_15, %c0_16] : memref<3x64x128xf32, #tpu.memory_space<vmem>>, vector<1x64x128xf32>
    %12 = vector.shape_cast %11 : vector<1x64x128xf32> to vector<64x128xf32>
    %cst_17 = arith.constant dense<0.000000e+00> : vector<16x128xf32>
    %13 = tpu.matmul %10, %12, %cst_17 {dimension_numbers = #tpu.dot_dimension_numbers<[1], [0], [0], [1], [0, 0, 1, 1], [], []>} : vector<16x64xf32>, vector<64x128xf32>, vector<16x128xf32> -> vector<16x128xf32>
    %c2 = arith.constant 2 : index
    %c0_18 = arith.constant 0 : index
    %14 = vector.load %arg10[%c2, %c0_18] : memref<18x64xf32, #tpu.memory_space<vmem>>, vector<16x64xf32>
    %c2_19 = arith.constant 2 : index
    %c0_20 = arith.constant 0 : index
    %c0_21 = arith.constant 0 : index
    %15 = vector.load %arg2[%c2_19, %c0_20, %c0_21] : memref<3x64x128xf32, #tpu.memory_space<vmem>>, vector<1x64x128xf32>
    %16 = vector.shape_cast %15 : vector<1x64x128xf32> to vector<64x128xf32>
    %cst_22 = arith.constant dense<0.000000e+00> : vector<16x128xf32>
    %17 = tpu.matmul %14, %16, %cst_22 {dimension_numbers = #tpu.dot_dimension_numbers<[1], [0], [0], [1], [0, 0, 1, 1], [], []>} : vector<16x64xf32>, vector<64x128xf32>, vector<16x128xf32> -> vector<16x128xf32>
    %18 = arith.addf %9, %13 : vector<16x128xf32>
    %c0_23 = arith.constant 0 : index
    %c0_24 = arith.constant 0 : index
    %19 = vector.load %arg3[%c0_23, %c0_24] : memref<1x128xf32, #tpu.memory_space<vmem>>, vector<1x128xf32>
    %20 = vector.broadcast %19 : vector<1x128xf32> to vector<16x128xf32>
    %21 = arith.addf %17, %20 : vector<16x128xf32>
    %22 = arith.addf %18, %21 : vector<16x128xf32>
    %cst_25 = arith.constant 0.000000e+00 : f32
    %23 = vector.broadcast %cst_25 : f32 to vector<16x128xf32>
    %24 = arith.maximumf %22, %23 : vector<16x128xf32>
    %cst_26 = arith.constant 0.000000e+00 : f32
    %25 = vector.broadcast %cst_26 : f32 to vector<1x128xf32>
    %c0_27 = arith.constant 0 : index
    %c0_28 = arith.constant 0 : index
    %26 = vector.load %arg11[%c0_27, %c0_28] : memref<18x128xf32, #tpu.memory_space<vmem>>, vector<1x128xf32>
    tpu.vector_store %arg11[%c0_27, %c0_28], %25 {strides = array<i32>} : memref<18x128xf32, #tpu.memory_space<vmem>>, vector<1x128xf32>,
    %c1_29 = arith.constant 1 : index
    %c0_30 = arith.constant 0 : index
    %27 = vector.load %arg11[%c1_29, %c0_30] : memref<18x128xf32, #tpu.memory_space<vmem>>, vector<16x128xf32>
    tpu.vector_store %arg11[%c1_29, %c0_30], %24 {strides = array<i32>} : memref<18x128xf32, #tpu.memory_space<vmem>>, vector<16x128xf32>,
    %c17_31 = arith.constant 17 : index
    %c0_32 = arith.constant 0 : index
    %28 = vector.load %arg11[%c17_31, %c0_32] : memref<18x128xf32, #tpu.memory_space<vmem>>, vector<1x128xf32>
    tpu.vector_store %arg11[%c17_31, %c0_32], %25 {strides = array<i32>} : memref<18x128xf32, #tpu.memory_space<vmem>>, vector<1x128xf32>,
    %c0_33 = arith.constant 0 : index
    %c0_34 = arith.constant 0 : index
    %29 = vector.load %arg11[%c0_33, %c0_34] : memref<18x128xf32, #tpu.memory_space<vmem>>, vector<16x128xf32>
    %c0_35 = arith.constant 0 : index
    %c0_36 = arith.constant 0 : index
    %c0_37 = arith.constant 0 : index
    %30 = vector.load %arg4[%c0_35, %c0_36, %c0_37] : memref<3x128x128xf32, #tpu.memory_space<vmem>>, vector<1x128x128xf32>
    %31 = vector.shape_cast %30 : vector<1x128x128xf32> to vector<128x128xf32>
    %cst_38 = arith.constant dense<0.000000e+00> : vector<16x128xf32>
    %32 = tpu.matmul %29, %31, %cst_38 {dimension_numbers = #tpu.dot_dimension_numbers<[1], [0], [0], [1], [0, 0, 1, 1], [], []>} : vector<16x128xf32>, vector<128x128xf32>, vector<16x128xf32> -> vector<16x128xf32>
    %c1_39 = arith.constant 1 : index
    %c0_40 = arith.constant 0 : index
    %33 = vector.load %arg11[%c1_39, %c0_40] : memref<18x128xf32, #tpu.memory_space<vmem>>, vector<16x128xf32>
    %c1_41 = arith.constant 1 : index
    %c0_42 = arith.constant 0 : index
    %c0_43 = arith.constant 0 : index
    %34 = vector.load %arg4[%c1_41, %c0_42, %c0_43] : memref<3x128x128xf32, #tpu.memory_space<vmem>>, vector<1x128x128xf32>
    %35 = vector.shape_cast %34 : vector<1x128x128xf32> to vector<128x128xf32>
    %cst_44 = arith.constant dense<0.000000e+00> : vector<16x128xf32>
    %36 = tpu.matmul %33, %35, %cst_44 {dimension_numbers = #tpu.dot_dimension_numbers<[1], [0], [0], [1], [0, 0, 1, 1], [], []>} : vector<16x128xf32>, vector<128x128xf32>, vector<16x128xf32> -> vector<16x128xf32>
    %c2_45 = arith.constant 2 : index
    %c0_46 = arith.constant 0 : index
    %37 = vector.load %arg11[%c2_45, %c0_46] : memref<18x128xf32, #tpu.memory_space<vmem>>, vector<16x128xf32>
    %c2_47 = arith.constant 2 : index
    %c0_48 = arith.constant 0 : index
    %c0_49 = arith.constant 0 : index
    %38 = vector.load %arg4[%c2_47, %c0_48, %c0_49] : memref<3x128x128xf32, #tpu.memory_space<vmem>>, vector<1x128x128xf32>
    %39 = vector.shape_cast %38 : vector<1x128x128xf32> to vector<128x128xf32>
    %cst_50 = arith.constant dense<0.000000e+00> : vector<16x128xf32>
    %40 = tpu.matmul %37, %39, %cst_50 {dimension_numbers = #tpu.dot_dimension_numbers<[1], [0], [0], [1], [0, 0, 1, 1], [], []>} : vector<16x128xf32>, vector<128x128xf32>, vector<16x128xf32> -> vector<16x128xf32>
    %41 = arith.addf %32, %36 : vector<16x128xf32>
    %c0_51 = arith.constant 0 : index
    %c0_52 = arith.constant 0 : index
    %42 = vector.load %arg5[%c0_51, %c0_52] : memref<1x128xf32, #tpu.memory_space<vmem>>, vector<1x128xf32>
    %43 = vector.broadcast %42 : vector<1x128xf32> to vector<16x128xf32>
    %44 = arith.addf %40, %43 : vector<16x128xf32>
    %45 = arith.addf %41, %44 : vector<16x128xf32>
    %cst_53 = arith.constant 0.000000e+00 : f32
    %46 = vector.broadcast %cst_53 : f32 to vector<16x128xf32>
    %47 = arith.maximumf %45, %46 : vector<16x128xf32>
    %c0_54 = arith.constant 0 : index
    %c0_55 = arith.constant 0 : index
    %c0_56 = arith.constant 0 : index
    %48 = vector.load %arg8[%c0_54, %c0_55, %c0_56] : memref<1x16x128xf32, #tpu.memory_space<vmem>>, vector<1x16x128xf32>
    %49 = vector.shape_cast %48 : vector<1x16x128xf32> to vector<16x128xf32>
    %50 = vector.shape_cast %47 : vector<16x128xf32> to vector<1x16x128xf32>
    tpu.vector_store %arg8[%c0_54, %c0_55, %c0_56], %50 {strides = array<i32>} : memref<1x16x128xf32, #tpu.memory_space<vmem>>, vector<1x16x128xf32>,
    %51 = vector.extract_strided_slice %47 {offsets = [0, 0], sizes = [16, 120], strides = [1, 1]} : vector<16x128xf32> to vector<16x120xf32>
    %52 = vector.extract_strided_slice %47 {offsets = [0, 8], sizes = [16, 120], strides = [1, 1]} : vector<16x128xf32> to vector<16x120xf32>
    %53 = arith.maximumf %51, %52 : vector<16x120xf32>
    %54 = vector.extract_strided_slice %53 {offsets = [0, 0], sizes = [15, 120], strides = [1, 1]} : vector<16x120xf32> to vector<15x120xf32>
    %55 = vector.extract_strided_slice %53 {offsets = [1, 0], sizes = [15, 120], strides = [1, 1]} : vector<16x120xf32> to vector<15x120xf32>
    %56 = arith.maximumf %54, %55 : vector<15x120xf32>
    %c0_57 = arith.constant 0 : index
    %c0_58 = arith.constant 0 : index
    %c0_59 = arith.constant 0 : index
    %57 = vector.load %arg6[%c0_57, %c0_58, %c0_59] : memref<2x4x15xf32, #tpu.memory_space<vmem>>, vector<1x4x15xf32>
    %58 = vector.shape_cast %57 : vector<1x4x15xf32> to vector<4x15xf32>
    %cst_60 = arith.constant dense<0.000000e+00> : vector<4x120xf32>
    %59 = tpu.matmul %58, %56, %cst_60 {dimension_numbers = #tpu.dot_dimension_numbers<[1], [0], [0], [1], [0, 0, 1, 1], [], []>} : vector<4x15xf32>, vector<15x120xf32>, vector<4x120xf32> -> vector<4x120xf32>
    %c0_61 = arith.constant 0 : index
    %c0_62 = arith.constant 0 : index
    %c0_63 = arith.constant 0 : index
    %60 = vector.load %arg7[%c0_61, %c0_62, %c0_63] : memref<2x120x128xf32, #tpu.memory_space<vmem>>, vector<1x120x128xf32>
    %61 = vector.shape_cast %60 : vector<1x120x128xf32> to vector<120x128xf32>
    %cst_64 = arith.constant dense<0.000000e+00> : vector<4x128xf32>
    %62 = tpu.matmul %59, %61, %cst_64 {dimension_numbers = #tpu.dot_dimension_numbers<[1], [0], [0], [1], [0, 0, 1, 1], [], []>} : vector<4x120xf32>, vector<120x128xf32>, vector<4x128xf32> -> vector<4x128xf32>
    %c1_65 = arith.constant 1 : index
    %c0_66 = arith.constant 0 : index
    %c0_67 = arith.constant 0 : index
    %63 = vector.load %arg6[%c1_65, %c0_66, %c0_67] : memref<2x4x15xf32, #tpu.memory_space<vmem>>, vector<1x4x15xf32>
    %64 = vector.shape_cast %63 : vector<1x4x15xf32> to vector<4x15xf32>
    %cst_68 = arith.constant dense<0.000000e+00> : vector<4x120xf32>
    %65 = tpu.matmul %64, %56, %cst_68 {dimension_numbers = #tpu.dot_dimension_numbers<[1], [0], [0], [1], [0, 0, 1, 1], [], []>} : vector<4x15xf32>, vector<15x120xf32>, vector<4x120xf32> -> vector<4x120xf32>
    %c1_69 = arith.constant 1 : index
    %c0_70 = arith.constant 0 : index
    %c0_71 = arith.constant 0 : index
    %66 = vector.load %arg7[%c1_69, %c0_70, %c0_71] : memref<2x120x128xf32, #tpu.memory_space<vmem>>, vector<1x120x128xf32>
    %67 = vector.shape_cast %66 : vector<1x120x128xf32> to vector<120x128xf32>
    %cst_72 = arith.constant dense<0.000000e+00> : vector<4x128xf32>
    %68 = tpu.matmul %65, %67, %cst_72 {dimension_numbers = #tpu.dot_dimension_numbers<[1], [0], [0], [1], [0, 0, 1, 1], [], []>} : vector<4x120xf32>, vector<120x128xf32>, vector<4x128xf32> -> vector<4x128xf32>
    %69 = arith.addf %62, %68 : vector<4x128xf32>
    %c0_73 = arith.constant 0 : index
    %c0_74 = arith.constant 0 : index
    %c0_75 = arith.constant 0 : index
    %70 = vector.load %arg9[%c0_73, %c0_74, %c0_75] : memref<1x4x128xf32, #tpu.memory_space<vmem>>, vector<1x4x128xf32>
    %71 = vector.shape_cast %70 : vector<1x4x128xf32> to vector<4x128xf32>
    %72 = vector.shape_cast %69 : vector<4x128xf32> to vector<1x4x128xf32>
    tpu.vector_store %arg9[%c0_73, %c0_74, %c0_75], %72 {strides = array<i32>} : memref<1x4x128xf32, #tpu.memory_space<vmem>>, vector<1x4x128xf32>,
    return
  }
  func.func @transform_0(%arg0: i32) -> (i32, i32, i32) {
    %c0_i32 = arith.constant 0 : i32
    %c0_i32_0 = arith.constant 0 : i32
    %c0_i32_1 = arith.constant 0 : i32
    return %arg0, %c0_i32, %c0_i32_0 : i32, i32, i32
  }
  func.func @transform_1(%arg0: i32) -> (i32, i32, i32) {
    %c0_i32 = arith.constant 0 : i32
    %c0_i32_0 = arith.constant 0 : i32
    %c0_i32_1 = arith.constant 0 : i32
    %c0_i32_2 = arith.constant 0 : i32
    return %c0_i32, %c0_i32_0, %c0_i32_1 : i32, i32, i32
  }
  func.func @transform_2(%arg0: i32) -> (i32, i32) {
    %c0_i32 = arith.constant 0 : i32
    %c0_i32_0 = arith.constant 0 : i32
    %c0_i32_1 = arith.constant 0 : i32
    return %c0_i32, %c0_i32_0 : i32, i32
  }
  func.func @transform_3(%arg0: i32) -> (i32, i32, i32) {
    %c0_i32 = arith.constant 0 : i32
    %c0_i32_0 = arith.constant 0 : i32
    %c0_i32_1 = arith.constant 0 : i32
    %c0_i32_2 = arith.constant 0 : i32
    return %c0_i32, %c0_i32_0, %c0_i32_1 : i32, i32, i32
  }
  func.func @transform_4(%arg0: i32) -> (i32, i32) {
    %c0_i32 = arith.constant 0 : i32
    %c0_i32_0 = arith.constant 0 : i32
    %c0_i32_1 = arith.constant 0 : i32
    return %c0_i32, %c0_i32_0 : i32, i32
  }
  func.func @transform_5(%arg0: i32) -> (i32, i32, i32) {
    %c0_i32 = arith.constant 0 : i32
    %c0_i32_0 = arith.constant 0 : i32
    %c0_i32_1 = arith.constant 0 : i32
    %c0_i32_2 = arith.constant 0 : i32
    return %c0_i32, %c0_i32_0, %c0_i32_1 : i32, i32, i32
  }
  func.func @transform_6(%arg0: i32) -> (i32, i32, i32) {
    %c0_i32 = arith.constant 0 : i32
    %c0_i32_0 = arith.constant 0 : i32
    %c0_i32_1 = arith.constant 0 : i32
    %c0_i32_2 = arith.constant 0 : i32
    return %c0_i32, %c0_i32_0, %c0_i32_1 : i32, i32, i32
  }
  func.func @transform_7(%arg0: i32) -> (i32, i32, i32) {
    %c0_i32 = arith.constant 0 : i32
    %c0_i32_0 = arith.constant 0 : i32
    %c0_i32_1 = arith.constant 0 : i32
    return %arg0, %c0_i32, %c0_i32_0 : i32, i32, i32
  }
  func.func @transform_8(%arg0: i32) -> (i32, i32, i32) {
    %c0_i32 = arith.constant 0 : i32
    %c0_i32_0 = arith.constant 0 : i32
    %c0_i32_1 = arith.constant 0 : i32
    return %arg0, %c0_i32, %c0_i32_0 : i32, i32, i32
  }
}

</mosaic_0001>

<llo_original>
// kernel: tile.13
$region0: #{tile.13}
  #allocation0 [shape = 's32[1]{0}', space=sflag, size = 0x4, scoped, tag = 'scoped memory for tile.13']
  %s0 = inlined_call_operand.vmem [shape: f32[8], index: 0, kind: input, shape index: {}]
  %s1 = inlined_call_operand.vmem [shape: f32[16,8], index: 1, kind: output, shape index: {}]
  // Predicated region
  $region2: #{tile.13} parent=0 // pred_check
    _
  $region3: #{tile.13} parent=0 // pred_check_branch
    %3 = sbr.rel (0) target = $region5
  $region4: #{tile.13} parent=0 // pred_region
    _
  $region5: #{tile.13} parent=0 // pred_fallthru
    _
  %v4 = vld [vmem:[%s0] ss:$0 sm:$0xff]
  %5 = vst [vmem:[%s1] sm:$0xff] %v4
  %s6 = scalar_lea.vmem %s1, 8
  %7 = vst [vmem:[%s6] sm:$0xff] %v4

// kernel: tile.14
$region0: #{tile.14}
  %s0 = inlined_call_operand.vmem [shape: f32[16,8], index: 0, kind: input, shape index: {}]
  %s1 = inlined_call_operand.vmem [shape: f32[1,128], index: 1, kind: output, shape index: {}]
  $region1: #{tile.14} parent=0
    #allocation0 [shape = 'u8[4096]{0}', space=vmem, size = 0x1000, scoped, tag = 'scoped mem for output reshape']
    %v2 = vld [vmem:[%s0] sm:$0x1]
    %vm3 = vcmask 64512
    %4 = vst.msk [vmem:[#allocation0] sm:$0x1] %vm3, %v2
    %s5 = scalar_lea.vmem %s0, 15
    %v6 = vld [vmem:[%s5] sm:$0x1]
    %7 = vrot.lane.b32.xlu0 %v6, 120
    %v8 = vpop.permute.xlu0 %7
    %vm9 = vcmask 1048512
    %10 = vst.msk [vmem:[#allocation0] sm:$0x1] %vm9, %v8
    %s11 = scalar_lea.vmem %s0, 14
    %v12 = vld [vmem:[%s11] sm:$0x1]
    %13 = vrot.lane.b32.xlu0 %v12, 112
    %v14 = vpop.permute.xlu0 %13
    %vm15 = vcmask 982912
    %16 = vst.msk [vmem:[#allocation0] sm:$0x1] %vm15, %v14
    %s17 = scalar_lea.vmem %s0, 13
    %v18 = vld [vmem:[%s17] sm:$0x1]
    %19 = vrot.lane.b32.xlu0 %v18, 104
    %v20 = vpop.permute.xlu0 %19
    %vm21 = vcmask 917312
    %22 = vst.msk [vmem:[#allocation0] sm:$0x1] %vm21, %v20
    %s23 = scalar_lea.vmem %s0, 12
    %v24 = vld [vmem:[%s23] sm:$0x1]
    %25 = vrot.lane.b32.xlu0 %v24, 96
    %v26 = vpop.permute.xlu0 %25
    %vm27 = vcmask 851712
    %28 = vst.msk [vmem:[#allocation0] sm:$0x1] %vm27, %v26
    %s29 = scalar_lea.vmem %s0, 11
    %v30 = vld [vmem:[%s29] sm:$0x1]
    %31 = vrot.lane.b32.xlu0 %v30, 88
    %v32 = vpop.permute.xlu0 %31
    %vm33 = vcmask 786112
    %34 = vst.msk [vmem:[#allocation0] sm:$0x1] %vm33, %v32
    %s35 = scalar_lea.vmem %s0, 10
    %v36 = vld [vmem:[%s35] sm:$0x1]
    %37 = vrot.lane.b32.xlu0 %v36, 80
    %v38 = vpop.permute.xlu0 %37
    %vm39 = vcmask 720512
    %40 = vst.msk [vmem:[#allocation0] sm:$0x1] %vm39, %v38
    %s41 = scalar_lea.vmem %s0, 9
    %v42 = vld [vmem:[%s41] sm:$0x1]
    %43 = vrot.lane.b32.xlu0 %v42, 72
    %v44 = vpop.permute.xlu0 %43
    %vm45 = vcmask 654912
    %46 = vst.msk [vmem:[#allocation0] sm:$0x1] %vm45, %v44
    %s47 = scalar_lea.vmem %s0, 8
    %v48 = vld [vmem:[%s47] sm:$0x1]
    %49 = vrot.lane.b32.xlu0 %v48, 64
    %v50 = vpop.permute.xlu0 %49
    %vm51 = vcmask 589312
    %52 = vst.msk [vmem:[#allocation0] sm:$0x1] %vm51, %v50
    %s53 = scalar_lea.vmem %s0, 7
    %v54 = vld [vmem:[%s53] sm:$0x1]
    %55 = vrot.lane.b32.xlu0 %v54, 56
    %v56 = vpop.permute.xlu0 %55
    %vm57 = vcmask 523712
    %58 = vst.msk [vmem:[#allocation0] sm:$0x1] %vm57, %v56
    %s59 = scalar_lea.vmem %s0, 6
    %v60 = vld [vmem:[%s59] sm:$0x1]
    %61 = vrot.lane.b32.xlu0 %v60, 48
    %v62 = vpop.permute.xlu0 %61
    %vm63 = vcmask 458112
    %64 = vst.msk [vmem:[#allocation0] sm:$0x1] %vm63, %v62
    %s65 = scalar_lea.vmem %s0, 5
    %v66 = vld [vmem:[%s65] sm:$0x1]
    %67 = vrot.lane.b32.xlu0 %v66, 40
    %v68 = vpop.permute.xlu0 %67
    %vm69 = vcmask 392512
    %70 = vst.msk [vmem:[#allocation0] sm:$0x1] %vm69, %v68
    %s71 = scalar_lea.vmem %s0, 4
    %v72 = vld [vmem:[%s71] sm:$0x1]
    %73 = vrot.lane.b32.xlu0 %v72, 32
    %v74 = vpop.permute.xlu0 %73
    %vm75 = vcmask 326912
    %76 = vst.msk [vmem:[#allocation0] sm:$0x1] %vm75, %v74
    %s77 = scalar_lea.vmem %s0, 3
    %v78 = vld [vmem:[%s77] sm:$0x1]
    %79 = vrot.lane.b32.xlu0 %v78, 24
    %v80 = vpop.permute.xlu0 %79
    %vm81 = vcmask 261312
    %82 = vst.msk [vmem:[#allocation0] sm:$0x1] %vm81, %v80
    %s83 = scalar_lea.vmem %s0, 2
    %v84 = vld [vmem:[%s83] sm:$0x1]
    %85 = vrot.lane.b32.xlu0 %v84, 16
    %v86 = vpop.permute.xlu0 %85
    %vm87 = vcmask 195712
    %88 = vst.msk [vmem:[#allocation0] sm:$0x1] %vm87, %v86
    %s89 = scalar_lea.vmem %s0, 1
    %v90 = vld [vmem:[%s89] sm:$0x1]
    %91 = vrot.lane.b32.xlu0 %v90, 8
    %v92 = vpop.permute.xlu0 %91
    %vm93 = vcmask 130112
    %94 = vst.msk [vmem:[#allocation0] sm:$0x1] %vm93, %v92
    %s96 = sshllo.u32 0, 1
    %v98 = vld [vmem:[#allocation0] sm:%s96]
    %s99 = sshllo.u32 0, 1
    %100 = vst [vmem:[%s1] sm:%s99] %v98

// kernel: downsample_forward.1
$region0: #{downsample_forward.1}
  #allocation0 [shape = 'u32[]', space=smem, size = 0x4, offset = 0x4, fixed_abs, tag = 'smem constant byte address 0x4 - core index']
  #allocation1 [shape = 'u32[144,128]{1,0:T(1,128)}', space=vmem, size = 0x12000, scoped, tag = 'internal scratch']
  #allocation2 [shape = 'f32[18,64]{1,0:T(8,128)}', space=vmem, size = 0x3000, scoped, tag = 'scratch operand']
  #allocation3 [shape = 'f32[18,128]{1,0:T(8,128)}', space=vmem, size = 0x3000, scoped, tag = 'scratch operand']
  %s0 = inlined_call_operand.vmem [shape: f32[2,16,64], index: 0, kind: input, shape index: {}]
  %s1 = inlined_call_operand.vmem [shape: f32[3,64,128], index: 1, kind: input, shape index: {}]
  %s2 = inlined_call_operand.vmem [shape: f32[1,128], index: 2, kind: input, shape index: {}]
  %s3 = inlined_call_operand.vmem [shape: f32[3,128,128], index: 3, kind: input, shape index: {}]
  %s4 = inlined_call_operand.vmem [shape: f32[1,128], index: 4, kind: input, shape index: {}]
  %s5 = inlined_call_operand.vmem [shape: f32[2,4,15], index: 5, kind: input, shape index: {}]
  %s6 = inlined_call_operand.vmem [shape: f32[2,120,128], index: 6, kind: input, shape index: {}]
  %s7 = inlined_call_operand.vmem [shape: f32[2,16,128], index: 7, kind: output, shape index: {0}]
  %s8 = inlined_call_operand.vmem [shape: f32[2,4,128], index: 8, kind: output, shape index: {1}]
  %9 = xla_tuple %s7, %s8
  %s10 = sld [smem:[#allocation0]]
  $region69: #{downsample_forward.1} parent=0
    _
  %s12 = ssub.s32 1, %s10
  %s13 = scalar_select 0, %s12, %s10
  loop: start=0, step=1, limit=4
  $region2: #{downsample_forward.1} parent=0 // loop_pre_header
    _
  $region3: #{downsample_forward.1} parent=0 // loop_header
    %s15 = sphi 0, %s19
    %p16 = scmp.ge.s32.totalorder %s15, 4
    %s25 = sphi 0, %s27
    %s28 = sphi 0, %s25
    %s29 = sphi 0, %s28
    %s45 = sphi 0, %s29
    %s49 = sphi 0, %s49
    %s51 = sphi 0, %s49
    %s52 = sphi 0, %s51
    %s66 = sphi 0, %s52
    %s70 = sphi 0, %s70
    %s72 = sphi 0, %s70
    %s73 = sphi 0, %s72
    %s87 = sphi 0, %s73
    %s91 = sphi 0, %s91
    %s93 = sphi 0, %s91
    %s94 = sphi 0, %s93
    %s108 = sphi 0, %s94
    %s112 = sphi 0, %s112
    %s114 = sphi 0, %s112
    %s115 = sphi 0, %s114
    %s129 = sphi 0, %s115
    %s133 = sphi 0, %s133
    %s135 = sphi 0, %s133
    %s136 = sphi 0, %s135
    %s150 = sphi 0, %s136
    %s154 = sphi 0, %s154
    %s156 = sphi 0, %s154
    %s157 = sphi 0, %s156
    %s171 = sphi 0, %s157
    %s177 = sphi 0, %s179
    %s180 = sphi 0, %s177
    %s181 = sphi 0, %s180
    %s197 = sphi 0, %s181
    %s203 = sphi 0, %s205
    %s206 = sphi 0, %s203
    %s207 = sphi 0, %s206
    %s223 = sphi 0, %s207
  $region4: #{downsample_forward.1} parent=0 // loop_header_branch
    %18 = sbr.rel (%p16) target = $region8
  $region5: #{downsample_forward.1} parent=0 // loop_body
    %s20 = ssub.s32 %s15, 1
    %s21 = ssub.s32 %s15, 2
    %s22 = sadd.s32 %s15, 1
    %s23 = ssub.s32 %s15, %s22
    %p24 = scmp.eq.s32.totalorder %s23, 0
    %s26 = sadd.s32 %s25, 1
    %s27 = scalar_select %p24, %s25, %s26
    %p30 = pneg %p24
    %p31 = scmp.eq.s32.totalorder %s15, 1
    %p32 = por %p30, %p31
    %p33 = scmp.ne.s32.totalorder %s25, %s28
    %p34 = scmp.eq.s32.totalorder %s15, 0
    %p35 = por %p33, %p34
    %p36 = scmp.ne.s32.totalorder %s25, %s28
    %p37 = scmp.eq.s32.totalorder %s20, 1
    %p38 = por %p36, %p37
    %p39 = scmp.ne.s32.totalorder %s28, %s29
    %p40 = scmp.eq.s32.totalorder %s20, 0
    %p41 = por %p39, %p40
    %p42 = scmp.ne.s32.totalorder %s28, %s29
    %p43 = scmp.eq.s32.totalorder %s21, 1
    %p44 = por %p42, %p43
    %p46 = scmp.ne.s32.totalorder %s29, %s45
    %p47 = scmp.eq.s32.totalorder %s21, 0
    %p48 = por %p46, %p47
    %s50 = sadd.s32 %s49, 1
    %p53 = scmp.eq.s32.totalorder %s15, 1
    %p54 = scmp.ne.s32.totalorder %s49, %s51
    %p55 = scmp.eq.s32.totalorder %s15, 0
    %p56 = por %p54, %p55
    %p57 = scmp.ne.s32.totalorder %s49, %s51
    %p58 = scmp.eq.s32.totalorder %s20, 1
    %p59 = por %p57, %p58
    %p60 = scmp.ne.s32.totalorder %s51, %s52
    %p61 = scmp.eq.s32.totalorder %s20, 0
    %p62 = por %p60, %p61
    %p63 = scmp.ne.s32.totalorder %s51, %s52
    %p64 = scmp.eq.s32.totalorder %s21, 1
    %p65 = por %p63, %p64
    %p67 = scmp.ne.s32.totalorder %s52, %s66
    %p68 = scmp.eq.s32.totalorder %s21, 0
    %p69 = por %p67, %p68
    %s71 = sadd.s32 %s70, 1
    %p74 = scmp.eq.s32.totalorder %s15, 1
    %p75 = scmp.ne.s32.totalorder %s70, %s72
    %p76 = scmp.eq.s32.totalorder %s15, 0
    %p77 = por %p75, %p76
    %p78 = scmp.ne.s32.totalorder %s70, %s72
    %p79 = scmp.eq.s32.totalorder %s20, 1
    %p80 = por %p78, %p79
    %p81 = scmp.ne.s32.totalorder %s72, %s73
    %p82 = scmp.eq.s32.totalorder %s20, 0
    %p83 = por %p81, %p82
    %p84 = scmp.ne.s32.totalorder %s72, %s73
    %p85 = scmp.eq.s32.totalorder %s21, 1
    %p86 = por %p84, %p85
    %p88 = scmp.ne.s32.totalorder %s73, %s87
    %p89 = scmp.eq.s32.totalorder %s21, 0
    %p90 = por %p88, %p89
    %s92 = sadd.s32 %s91, 1
    %p95 = scmp.eq.s32.totalorder %s15, 1
    %p96 = scmp.ne.s32.totalorder %s91, %s93
    %p97 = scmp.eq.s32.totalorder %s15, 0
    %p98 = por %p96, %p97
    %p99 = scmp.ne.s32.totalorder %s91, %s93
    %p100 = scmp.eq.s32.totalorder %s20, 1
    %p101 = por %p99, %p100
    %p102 = scmp.ne.s32.totalorder %s93, %s94
    %p103 = scmp.eq.s32.totalorder %s20, 0
    %p104 = por %p102, %p103
    %p105 = scmp.ne.s32.totalorder %s93, %s94
    %p106 = scmp.eq.s32.totalorder %s21, 1
    %p107 = por %p105, %p106
    %p109 = scmp.ne.s32.totalorder %s94, %s108
    %p110 = scmp.eq.s32.totalorder %s21, 0
    %p111 = por %p109, %p110
    %s113 = sadd.s32 %s112, 1
    %p116 = scmp.eq.s32.totalorder %s15, 1
    %p117 = scmp.ne.s32.totalorder %s112, %s114
    %p118 = scmp.eq.s32.totalorder %s15, 0
    %p119 = por %p117, %p118
    %p120 = scmp.ne.s32.totalorder %s112, %s114
    %p121 = scmp.eq.s32.totalorder %s20, 1
    %p122 = por %p120, %p121
    %p123 = scmp.ne.s32.totalorder %s114, %s115
    %p124 = scmp.eq.s32.totalorder %s20, 0
    %p125 = por %p123, %p124
    %p126 = scmp.ne.s32.totalorder %s114, %s115
    %p127 = scmp.eq.s32.totalorder %s21, 1
    %p128 = por %p126, %p127
    %p130 = scmp.ne.s32.totalorder %s115, %s129
    %p131 = scmp.eq.s32.totalorder %s21, 0
    %p132 = por %p130, %p131
    %s134 = sadd.s32 %s133, 1
    %p137 = scmp.eq.s32.totalorder %s15, 1
    %p138 = scmp.ne.s32.totalorder %s133, %s135
    %p139 = scmp.eq.s32.totalorder %s15, 0
    %p140 = por %p138, %p139
    %p141 = scmp.ne.s32.totalorder %s133, %s135
    %p142 = scmp.eq.s32.totalorder %s20, 1
    %p143 = por %p141, %p142
    %p144 = scmp.ne.s32.totalorder %s135, %s136
    %p145 = scmp.eq.s32.totalorder %s20, 0
    %p146 = por %p144, %p145
    %p147 = scmp.ne.s32.totalorder %s135, %s136
    %p148 = scmp.eq.s32.totalorder %s21, 1
    %p149 = por %p147, %p148
    %p151 = scmp.ne.s32.totalorder %s136, %s150
    %p152 = scmp.eq.s32.totalorder %s21, 0
    %p153 = por %p151, %p152
    %s155 = sadd.s32 %s154, 1
    %p158 = scmp.eq.s32.totalorder %s15, 1
    %p159 = scmp.ne.s32.totalorder %s154, %s156
    %p160 = scmp.eq.s32.totalorder %s15, 0
    %p161 = por %p159, %p160
    %p162 = scmp.ne.s32.totalorder %s154, %s156
    %p163 = scmp.eq.s32.totalorder %s20, 1
    %p164 = por %p162, %p163
    %p165 = scmp.ne.s32.totalorder %s156, %s157
    %p166 = scmp.eq.s32.totalorder %s20, 0
    %p167 = por %p165, %p166
    %p168 = scmp.ne.s32.totalorder %s156, %s157
    %p169 = scmp.eq.s32.totalorder %s21, 1
    %p170 = por %p168, %p169
    %p172 = scmp.ne.s32.totalorder %s157, %s171
    %p173 = scmp.eq.s32.totalorder %s21, 0
    %p174 = por %p172, %p173
    %s175 = ssub.s32 %s15, %s22
    %p176 = scmp.eq.s32.totalorder %s175, 0
    %s178 = sadd.s32 %s177, 1
    %s179 = scalar_select %p176, %s177, %s178
    %p182 = pneg %p176
    %p183 = scmp.eq.s32.totalorder %s15, 1
    %p184 = por %p182, %p183
    %p185 = scmp.ne.s32.totalorder %s177, %s180
    %p186 = scmp.eq.s32.totalorder %s15, 0
    %p187 = por %p185, %p186
    %p188 = scmp.ne.s32.totalorder %s177, %s180
    %p189 = scmp.eq.s32.totalorder %s20, 1
    %p190 = por %p188, %p189
    %p191 = scmp.ne.s32.totalorder %s180, %s181
    %p192 = scmp.eq.s32.totalorder %s20, 0
    %p193 = por %p191, %p192
    %p194 = scmp.ne.s32.totalorder %s180, %s181
    %p195 = scmp.eq.s32.totalorder %s21, 1
    %p196 = por %p194, %p195
    %p198 = scmp.ne.s32.totalorder %s181, %s197
    %p199 = scmp.eq.s32.totalorder %s21, 0
    %p200 = por %p198, %p199
    %s201 = ssub.s32 %s15, %s22
    %p202 = scmp.eq.s32.totalorder %s201, 0
    %s204 = sadd.s32 %s203, 1
    %s205 = scalar_select %p202, %s203, %s204
    %p208 = pneg %p202
    %p209 = scmp.eq.s32.totalorder %s15, 1
    %p210 = por %p208, %p209
    %p211 = scmp.ne.s32.totalorder %s203, %s206
    %p212 = scmp.eq.s32.totalorder %s15, 0
    %p213 = por %p211, %p212
    %p214 = scmp.ne.s32.totalorder %s203, %s206
    %p215 = scmp.eq.s32.totalorder %s20, 1
    %p216 = por %p214, %p215
    %p217 = scmp.ne.s32.totalorder %s206, %s207
    %p218 = scmp.eq.s32.totalorder %s20, 0
    %p219 = por %p217, %p218
    %p220 = scmp.ne.s32.totalorder %s206, %s207
    %p221 = scmp.eq.s32.totalorder %s21, 1
    %p222 = por %p220, %p221
    %p224 = scmp.ne.s32.totalorder %s207, %s223
    %p225 = scmp.eq.s32.totalorder %s21, 0
    %p226 = por %p224, %p225
    %p227 = scmp.le.s32.totalorder 1, %s15
    %p228 = scmp.lt.s32.totalorder %s15, 3
    %p229 = pnand %p227, %p228
    %p230 = pneg %p229
    // Predicated region
    $region9: #{downsample_forward.1} parent=5 // pred_check
      _
    $region10: #{downsample_forward.1} parent=5 // pred_check_branch
      %232 = sbr.rel (%p229) target = $region12
    $region11: #{downsample_forward.1} parent=5 // pred_region
      %s233 = ssub.s32 %s15, 1
      // Predicated region
      $region13: #{downsample_forward.1} parent=11 // pred_check
        %p234 = pneg %p62
      $region14: #{downsample_forward.1} parent=11 // pred_check_branch
        %236 = sbr.rel (%p234) target = $region16
      $region15: #{downsample_forward.1} parent=11 // pred_region
        _
      $region16: #{downsample_forward.1} parent=11 // pred_fallthru
        _
      // Predicated region
      $region17: #{downsample_forward.1} parent=11 // pred_check
        %p237 = pneg %p83
      $region18: #{downsample_forward.1} parent=11 // pred_check_branch
        %239 = sbr.rel (%p237) target = $region20
      $region19: #{downsample_forward.1} parent=11 // pred_region
        _
      $region20: #{downsample_forward.1} parent=11 // pred_fallthru
        _
      // Predicated region
      $region21: #{downsample_forward.1} parent=11 // pred_check
        %p240 = pneg %p104
      $region22: #{downsample_forward.1} parent=11 // pred_check_branch
        %242 = sbr.rel (%p240) target = $region24
      $region23: #{downsample_forward.1} parent=11 // pred_region
        _
      $region24: #{downsample_forward.1} parent=11 // pred_fallthru
        _
      // Predicated region
      $region25: #{downsample_forward.1} parent=11 // pred_check
        %p243 = pneg %p125
      $region26: #{downsample_forward.1} parent=11 // pred_check_branch
        %245 = sbr.rel (%p243) target = $region28
      $region27: #{downsample_forward.1} parent=11 // pred_region
        _
      $region28: #{downsample_forward.1} parent=11 // pred_fallthru
        _
      // Predicated region
      $region29: #{downsample_forward.1} parent=11 // pred_check
        %p246 = pneg %p146
      $region30: #{downsample_forward.1} parent=11 // pred_check_branch
        %248 = sbr.rel (%p246) target = $region32
      $region31: #{downsample_forward.1} parent=11 // pred_region
        _
      $region32: #{downsample_forward.1} parent=11 // pred_fallthru
        _
      // Predicated region
      $region33: #{downsample_forward.1} parent=11 // pred_check
        %p249 = pneg %p167
      $region34: #{downsample_forward.1} parent=11 // pred_check_branch
        %251 = sbr.rel (%p249) target = $region36
      $region35: #{downsample_forward.1} parent=11 // pred_region
        _
      $region36: #{downsample_forward.1} parent=11 // pred_fallthru
        _
    $region12: #{downsample_forward.1} parent=5 // pred_fallthru
      _
    %p252 = scmp.lt.s32.totalorder %s15, 2
    // Predicated region
    $region37: #{downsample_forward.1} parent=5 // pred_check
      %p253 = pneg %p252
    $region38: #{downsample_forward.1} parent=5 // pred_check_branch
      %255 = sbr.rel (%p253) target = $region40
    $region39: #{downsample_forward.1} parent=5 // pred_region
      // Predicated region
      $region41: #{downsample_forward.1} parent=39 // pred_check
        %p256 = pneg %p35
      $region42: #{downsample_forward.1} parent=39 // pred_check_branch
        %258 = sbr.rel (%p256) target = $region44
      $region43: #{downsample_forward.1} parent=39 // pred_region
        %p259 = scmp.lt.s32.totalorder %s15, 1
        %s260 = scalar_select %p259, %s15, 1
        %s261 = smul.addr %s260, 2
        %s262 = smul.addr %s261, 8
        %s263 = scalar_lea.vmem %s0, %s262
      $region44: #{downsample_forward.1} parent=39 // pred_fallthru
        _
    $region40: #{downsample_forward.1} parent=5 // pred_fallthru
      _
    %p264 = scmp.le.s32.totalorder 1, %s15
    %p265 = scmp.lt.s32.totalorder %s15, 3
    %p266 = pnand %p264, %p265
    %p267 = pneg %p266
    // Predicated region
    $region45: #{downsample_forward.1} parent=5 // pred_check
      _
    $region46: #{downsample_forward.1} parent=5 // pred_check_branch
      %269 = sbr.rel (%p266) target = $region48
    $region47: #{downsample_forward.1} parent=5 // pred_region
      %s270 = ssub.s32 %s15, 1
      %p271 = scmp.lt.s32.totalorder %s20, 1
      %s272 = scalar_select %p271, %s20, 1
      %s273 = smul.addr %s272, 2
      %s274 = smul.addr %s273, 8
      %s275 = scalar_lea.vmem %s0, %s274
      %p276 = pneg %p41
      %p277 = pneg %p38
      %p278 = pneg %p62
      %p279 = pneg %p59
      %p280 = pneg %p83
      %p281 = pneg %p80
      %p282 = pneg %p104
      %p283 = pneg %p101
      %p284 = pneg %p125
      %p285 = pneg %p122
      %p286 = pneg %p146
      %p287 = pneg %p143
      %p288 = pneg %p167
      %p289 = pneg %p164
      %p290 = pneg %p193
      %p291 = pneg %p190
      %p292 = scmp.lt.s32.totalorder %s20, 1
      %s293 = scalar_select %p292, %s20, 1
      %s294 = smul.addr %s293, 2
      %s295 = smul.addr %s294, 8
      %s296 = scalar_lea.vmem %s7, %s295
      %p297 = pneg %p219
      %p298 = pneg %p216
      %p299 = scmp.lt.s32.totalorder %s20, 1
      %s300 = scalar_select %p299, %s20, 1
      %s301 = smul.addr %s300, 4
      %s302 = scalar_lea.vmem %s8, %s301
      %p303 = scmp.lt.s32.totalorder %s20, 1
      %s304 = scalar_select %p303, %s20, 1
      %s305 = smul.addr %s304, 2
      %s306 = smul.addr %s305, 8
      %s307 = scalar_lea.vmem %s0, %s306
      %p308 = scmp.lt.s32.totalorder %s20, 1
      %s309 = scalar_select %p308, %s20, 1
      %s310 = smul.addr %s309, 2
      %s311 = smul.addr %s310, 8
      %s312 = scalar_lea.vmem %s7, %s311
      %p313 = scmp.lt.s32.totalorder %s20, 1
      %s314 = scalar_select %p313, %s20, 1
      %s315 = smul.addr %s314, 4
      %s316 = scalar_lea.vmem %s8, %s315
      %vm317 = vcmask 516096
      %318 = vst.msk [vmem:[#allocation2] sm:$0x1] %vm317, 0.0
      %v319 = vld [vmem:[%s307] sm:$0xff]
      %v320 = vld [vmem:[%s307 + $0x8] sm:$0xff]
      %vm321 = vcmask 523264
      %322 = vst.msk [vmem:[#allocation2 + $0x1] sm:$0xff] %vm321, %v319
      %323 = vst.msk [vmem:[#allocation2 + $0x9] sm:$0xff] %vm321, %v320
      %324 = vst.msk [vmem:[#allocation2 + $0x11] sm:$0x1] %vm317, 0.0
      %v325 = vld [vmem:[#allocation2] sm:$0xff]
      %v326 = vld [vmem:[#allocation2 + $0x8] sm:$0xff]
      %v327 = vld [vmem:[%s1] sm:$0xff]
      %v328 = vld [vmem:[%s1 + $0x8] sm:$0xff]
      %v329 = vld [vmem:[%s1 + $0x10] sm:$0xff]
      %v330 = vld [vmem:[%s1 + $0x18] sm:$0xff]
      %v331 = vld [vmem:[%s1 + $0x20] sm:$0xff]
      %v332 = vld [vmem:[%s1 + $0x28] sm:$0xff]
      %v333 = vld [vmem:[%s1 + $0x30] sm:$0xff]
      %v334 = vld [vmem:[%s1 + $0x38] sm:$0xff]
      %v335 = vld [vmem:[#allocation2 + $0x1] sm:$0xff]
      %v336 = vld [vmem:[#allocation2 + $0x9] sm:$0xff]
      %s337 = scalar_lea.vmem %s1, 64
      %v338 = vld [vmem:[%s337] sm:$0xff]
      %v339 = vld [vmem:[%s337 + $0x8] sm:$0xff]
      %v340 = vld [vmem:[%s337 + $0x10] sm:$0xff]
      %v341 = vld [vmem:[%s337 + $0x18] sm:$0xff]
      %v342 = vld [vmem:[%s337 + $0x20] sm:$0xff]
      %v343 = vld [vmem:[%s337 + $0x28] sm:$0xff]
      %v344 = vld [vmem:[%s337 + $0x30] sm:$0xff]
      %v345 = vld [vmem:[%s337 + $0x38] sm:$0xff]
      %v347 = vsel %vm321, %v335, 0
      %v350 = vsel %vm321, %v336, 0
      %352 = vmatprep.subr.mxu0 0.0
      %353 = vmatpush1.msra.mxu0 %v338
      %354 = vmatprep.subr.mxu0 0.0
      %355 = vmatpush1.msra.mxu0 %v339
      %356 = vmatprep.subr.mxu0 0.0
      %357 = vmatpush1.msra.mxu0 %v340
      %358 = vmatprep.subr.mxu0 0.0
      %359 = vmatpush1.msra.mxu0 %v341
      %360 = vmatprep.subr.mxu0 0.0
      %361 = vmatpush1.msra.mxu0 %v342
      %362 = vmatprep.subr.mxu0 0.0
      %363 = vmatpush1.msra.mxu0 %v343
      %364 = vmatprep.subr.mxu0 0.0
      %365 = vmatpush1.msra.mxu0 %v344
      %366 = vmatprep.subr.mxu0 0.0
      %367 = vmatpush1.msra.mxu0 %v345
      %368 = vmatprep.subr.mxu0 0.0
      %369 = vmatpush1.msra.mxu0 0.0
      %370 = vmatprep.subr.mxu0 0.0
      %371 = vmatpush1.msra.mxu0 0.0
      %372 = vmatprep.subr.mxu0 0.0
      %373 = vmatpush1.msra.mxu0 0.0
      %374 = vmatprep.subr.mxu0 0.0
      %375 = vmatpush1.msra.mxu0 0.0
      %376 = vmatprep.subr.mxu0 0.0
      %377 = vmatpush1.msra.mxu0 0.0
      %378 = vmatprep.subr.mxu0 0.0
      %379 = vmatpush1.msra.mxu0 0.0
      %380 = vmatprep.subr.mxu0 0.0
      %381 = vmatpush1.msra.mxu0 0.0
      %382 = vmatprep.subr.mxu0 0.0
      %383 = vmatpush1.msra.mxu0 0.0
      %384 = vmatprep.subr.mxu0 0.0
      %385 = vmatpush1.msra.mxu0 0.0
      %386 = vmatprep.subr.mxu0 0.0
      %387 = vmatpush1.msra.mxu0 0.0
      %388 = vmatprep.subr.mxu0 0.0
      %389 = vmatpush1.msra.mxu0 0.0
      %390 = vmatprep.subr.mxu0 0.0
      %391 = vmatpush1.msra.mxu0 0.0
      %392 = vmatprep.subr.mxu0 0.0
      %393 = vmatpush1.msra.mxu0 0.0
      %394 = vmatprep.subr.mxu0 0.0
      %395 = vmatpush1.msra.mxu0 0.0
      %396 = vmatprep.subr.mxu0 0.0
      %397 = vmatpush1.msra.mxu0 0.0
      %398 = vmatprep.subr.mxu0 0.0
      %399 = vmatpush1.msra.mxu0 0.0
      %400 = vmatprep.subr.mxu0 0.0
      %401 = vmatpush1.msra.mxu0 0.0
      %402 = vmatprep.subr.mxu0 0.0
      %403 = vmatpush1.msra.mxu0 0.0
      %404 = vmatprep.subr.mxu0 0.0
      %405 = vmatpush1.msra.mxu0 0.0
      %406 = vmatprep.subr.mxu0 0.0
      %407 = vmatpush1.msra.mxu0 0.0
      %408 = vmatprep.subr.mxu0 0.0
      %409 = vmatpush1.msra.mxu0 0.0
      %410 = vmatprep.subr.mxu0 0.0
      %411 = vmatpush1.msra.mxu0 0.0
      %412 = vmatprep.subr.mxu0 0.0
      %413 = vmatpush1.msra.mxu0 0.0
      %414 = vmatprep.subr.mxu0 0.0
      %415 = vmatpush1.msra.mxu0 0.0
      %416 = vmatprep.mubr.f32.mxu0 0.0
      %417 = vmatmul.mubr.f32.gmra.mrb[0].mxu0 %v347
      %v418 = vpop.f32.mrb[0].mxu0
      %v419 = vadd.f32 0.0, %v418
      %v420 = vpop.f32.mrb[0].mxu0
      %421 = vmatprep.mubr.f32.mxu0 0.0
      %422 = vmatmul.mubr.f32.gmra.mrb[0].mxu0 %v350
      %v423 = vpop.f32.mrb[0].mxu0
      %v424 = vadd.f32 0.0, %v423
      %v425 = vpop.f32.mrb[0].mxu0
      %426 = vdwg.mxu0
      %v427 = vld [vmem:[#allocation2 + $0x2] sm:$0xff]
      %v428 = vld [vmem:[#allocation2 + $0xa] sm:$0xff]
      %s429 = scalar_lea.vmem %s1, 128
      %v430 = vld [vmem:[%s429] sm:$0xff]
      %v431 = vld [vmem:[%s429 + $0x8] sm:$0xff]
      %v432 = vld [vmem:[%s429 + $0x10] sm:$0xff]
      %v433 = vld [vmem:[%s429 + $0x18] sm:$0xff]
      %v434 = vld [vmem:[%s429 + $0x20] sm:$0xff]
      %v435 = vld [vmem:[%s429 + $0x28] sm:$0xff]
      %v436 = vld [vmem:[%s429 + $0x30] sm:$0xff]
      %v437 = vld [vmem:[%s429 + $0x38] sm:$0xff]
      %v439 = vsel %vm321, %v325, 0
      %v442 = vsel %vm321, %v326, 0
      %444 = vmatprep.subr.mxu0 0.0
      %445 = vmatpush1.msra.mxu0 %v327
      %446 = vmatprep.subr.mxu0 0.0
      %447 = vmatpush1.msra.mxu0 %v328
      %448 = vmatprep.subr.mxu0 0.0
      %449 = vmatpush1.msra.mxu0 %v329
      %450 = vmatprep.subr.mxu0 0.0
      %451 = vmatpush1.msra.mxu0 %v330
      %452 = vmatprep.subr.mxu0 0.0
      %453 = vmatpush1.msra.mxu0 %v331
      %454 = vmatprep.subr.mxu0 0.0
      %455 = vmatpush1.msra.mxu0 %v332
      %456 = vmatprep.subr.mxu0 0.0
      %457 = vmatpush1.msra.mxu0 %v333
      %458 = vmatprep.subr.mxu0 0.0
      %459 = vmatpush1.msra.mxu0 %v334
      %460 = vmatprep.subr.mxu0 0.0
      %461 = vmatpush1.msra.mxu0 0.0
      %462 = vmatprep.subr.mxu0 0.0
      %463 = vmatpush1.msra.mxu0 0.0
      %464 = vmatprep.subr.mxu0 0.0
      %465 = vmatpush1.msra.mxu0 0.0
      %466 = vmatprep.subr.mxu0 0.0
      %467 = vmatpush1.msra.mxu0 0.0
      %468 = vmatprep.subr.mxu0 0.0
      %469 = vmatpush1.msra.mxu0 0.0
      %470 = vmatprep.subr.mxu0 0.0
      %471 = vmatpush1.msra.mxu0 0.0
      %472 = vmatprep.subr.mxu0 0.0
      %473 = vmatpush1.msra.mxu0 0.0
      %474 = vmatprep.subr.mxu0 0.0
      %475 = vmatpush1.msra.mxu0 0.0
      %476 = vmatprep.subr.mxu0 0.0
      %477 = vmatpush1.msra.mxu0 0.0
      %478 = vmatprep.subr.mxu0 0.0
      %479 = vmatpush1.msra.mxu0 0.0
      %480 = vmatprep.subr.mxu0 0.0
      %481 = vmatpush1.msra.mxu0 0.0
      %482 = vmatprep.subr.mxu0 0.0
      %483 = vmatpush1.msra.mxu0 0.0
      %484 = vmatprep.subr.mxu0 0.0
      %485 = vmatpush1.msra.mxu0 0.0
      %486 = vmatprep.subr.mxu0 0.0
      %487 = vmatpush1.msra.mxu0 0.0
      %488 = vmatprep.subr.mxu0 0.0
      %489 = vmatpush1.msra.mxu0 0.0
      %490 = vmatprep.subr.mxu0 0.0
      %491 = vmatpush1.msra.mxu0 0.0
      %492 = vmatprep.subr.mxu0 0.0
      %493 = vmatpush1.msra.mxu0 0.0
      %494 = vmatprep.subr.mxu0 0.0
      %495 = vmatpush1.msra.mxu0 0.0
      %496 = vmatprep.subr.mxu0 0.0
      %497 = vmatpush1.msra.mxu0 0.0
      %498 = vmatprep.subr.mxu0 0.0
      %499 = vmatpush1.msra.mxu0 0.0
      %500 = vmatprep.subr.mxu0 0.0
      %501 = vmatpush1.msra.mxu0 0.0
      %502 = vmatprep.subr.mxu0 0.0
      %503 = vmatpush1.msra.mxu0 0.0
      %504 = vmatprep.subr.mxu0 0.0
      %505 = vmatpush1.msra.mxu0 0.0
      %506 = vmatprep.subr.mxu0 0.0
      %507 = vmatpush1.msra.mxu0 0.0
      %508 = vmatprep.mubr.f32.mxu0 0.0
      %509 = vmatmul.mubr.f32.gmra.mrb[0].mxu0 %v439
      %v510 = vpop.f32.mrb[0].mxu0
      %v511 = vadd.f32 %v419, %v510
      %v512 = vpop.f32.mrb[0].mxu0
      %513 = vmatprep.mubr.f32.mxu0 0.0
      %514 = vmatmul.mubr.f32.gmra.mrb[0].mxu0 %v442
      %v515 = vpop.f32.mrb[0].mxu0
      %v516 = vadd.f32 %v424, %v515
      %v517 = vpop.f32.mrb[0].mxu0
      %518 = vdwg.mxu0
      %v519 = vld [vmem:[%s2] sm:$0x1]
      %v521 = vlaneseq
      %v522 = vshrl.u32 %v521, 7
      %v523 = vsub.s32 0, %v522
      %v524 = vrot.slane %v519, %v523
      %v527 = vsel %vm321, %v427, 0
      %v530 = vsel %vm321, %v428, 0
      %532 = vmatprep.subr.mxu0 0.0
      %533 = vmatpush1.msra.mxu0 %v430
      %534 = vmatprep.subr.mxu0 0.0
      %535 = vmatpush1.msra.mxu0 %v431
      %536 = vmatprep.subr.mxu0 0.0
      %537 = vmatpush1.msra.mxu0 %v432
      %538 = vmatprep.subr.mxu0 0.0
      %539 = vmatpush1.msra.mxu0 %v433
      %540 = vmatprep.subr.mxu0 0.0
      %541 = vmatpush1.msra.mxu0 %v434
      %542 = vmatprep.subr.mxu0 0.0
      %543 = vmatpush1.msra.mxu0 %v435
      %544 = vmatprep.subr.mxu0 0.0
      %545 = vmatpush1.msra.mxu0 %v436
      %546 = vmatprep.subr.mxu0 0.0
      %547 = vmatpush1.msra.mxu0 %v437
      %548 = vmatprep.subr.mxu0 0.0
      %549 = vmatpush1.msra.mxu0 0.0
      %550 = vmatprep.subr.mxu0 0.0
      %551 = vmatpush1.msra.mxu0 0.0
      %552 = vmatprep.subr.mxu0 0.0
      %553 = vmatpush1.msra.mxu0 0.0
      %554 = vmatprep.subr.mxu0 0.0
      %555 = vmatpush1.msra.mxu0 0.0
      %556 = vmatprep.subr.mxu0 0.0
      %557 = vmatpush1.msra.mxu0 0.0
      %558 = vmatprep.subr.mxu0 0.0
      %559 = vmatpush1.msra.mxu0 0.0
      %560 = vmatprep.subr.mxu0 0.0
      %561 = vmatpush1.msra.mxu0 0.0
      %562 = vmatprep.subr.mxu0 0.0
      %563 = vmatpush1.msra.mxu0 0.0
      %564 = vmatprep.subr.mxu0 0.0
      %565 = vmatpush1.msra.mxu0 0.0
      %566 = vmatprep.subr.mxu0 0.0
      %567 = vmatpush1.msra.mxu0 0.0
      %568 = vmatprep.subr.mxu0 0.0
      %569 = vmatpush1.msra.mxu0 0.0
      %570 = vmatprep.subr.mxu0 0.0
      %571 = vmatpush1.msra.mxu0 0.0
      %572 = vmatprep.subr.mxu0 0.0
      %573 = vmatpush1.msra.mxu0 0.0
      %574 = vmatprep.subr.mxu0 0.0
      %575 = vmatpush1.msra.mxu0 0.0
      %576 = vmatprep.subr.mxu0 0.0
      %577 = vmatpush1.msra.mxu0 0.0
      %578 = vmatprep.subr.mxu0 0.0
      %579 = vmatpush1.msra.mxu0 0.0
      %580 = vmatprep.subr.mxu0 0.0
      %581 = vmatpush1.msra.mxu0 0.0
      %582 = vmatprep.subr.mxu0 0.0
      %583 = vmatpush1.msra.mxu0 0.0
      %584 = vmatprep.subr.mxu0 0.0
      %585 = vmatpush1.msra.mxu0 0.0
      %586 = vmatprep.subr.mxu0 0.0
      %587 = vmatpush1.msra.mxu0 0.0
      %588 = vmatprep.subr.mxu0 0.0
      %589 = vmatpush1.msra.mxu0 0.0
      %590 = vmatprep.subr.mxu0 0.0
      %591 = vmatpush1.msra.mxu0 0.0
      %592 = vmatprep.subr.mxu0 0.0
      %593 = vmatpush1.msra.mxu0 0.0
      %594 = vmatprep.subr.mxu0 0.0
      %595 = vmatpush1.msra.mxu0 0.0
      %596 = vmatprep.mubr.f32.mxu0 0.0
      %597 = vmatmul.mubr.f32.gmra.mrb[0].mxu0 %v527
      %v598 = vpop.f32.mrb[0].mxu0
      %v599 = vadd.f32 %v524, %v598
      %v600 = vpop.f32.mrb[0].mxu0
      %601 = vmatprep.mubr.f32.mxu0 0.0
      %602 = vmatmul.mubr.f32.gmra.mrb[0].mxu0 %v530
      %v603 = vpop.f32.mrb[0].mxu0
      %v604 = vadd.f32 %v524, %v603
      %v605 = vpop.f32.mrb[0].mxu0
      %606 = vdwg.mxu0
      %v607 = vadd.f32 %v511, %v599
      %v608 = vadd.f32 %v516, %v604
      %v609 = vmax.f32 %v607, 0.0
      %v610 = vmax.f32 %v608, 0.0
      %611 = vst [vmem:[#allocation3] sm:$0x1] 0.0
      %612 = vst [vmem:[#allocation3 + $0x1] sm:$0xff] %v609
      %613 = vst [vmem:[#allocation3 + $0x9] sm:$0xff] %v610
      %614 = vst [vmem:[#allocation3 + $0x11] sm:$0x1] 0.0
      %v615 = vld [vmem:[#allocation3] sm:$0xff]
      %v616 = vld [vmem:[#allocation3 + $0x8] sm:$0xff]
      %v617 = vld [vmem:[%s3] sm:$0xff]
      %v618 = vld [vmem:[%s3 + $0x8] sm:$0xff]
      %v619 = vld [vmem:[%s3 + $0x10] sm:$0xff]
      %v620 = vld [vmem:[%s3 + $0x18] sm:$0xff]
      %v621 = vld [vmem:[%s3 + $0x20] sm:$0xff]
      %v622 = vld [vmem:[%s3 + $0x28] sm:$0xff]
      %v623 = vld [vmem:[%s3 + $0x30] sm:$0xff]
      %v624 = vld [vmem:[%s3 + $0x38] sm:$0xff]
      %v625 = vld [vmem:[%s3 + $0x40] sm:$0xff]
      %v626 = vld [vmem:[%s3 + $0x48] sm:$0xff]
      %v627 = vld [vmem:[%s3 + $0x50] sm:$0xff]
      %v628 = vld [vmem:[%s3 + $0x58] sm:$0xff]
      %v629 = vld [vmem:[%s3 + $0x60] sm:$0xff]
      %v630 = vld [vmem:[%s3 + $0x68] sm:$0xff]
      %v631 = vld [vmem:[%s3 + $0x70] sm:$0xff]
      %v632 = vld [vmem:[%s3 + $0x78] sm:$0xff]
      %v633 = vld [vmem:[#allocation3 + $0x1] sm:$0xff]
      %v634 = vld [vmem:[#allocation3 + $0x9] sm:$0xff]
      %s635 = scalar_lea.vmem %s3, 128
      %v636 = vld [vmem:[%s635] sm:$0xff]
      %v637 = vld [vmem:[%s635 + $0x8] sm:$0xff]
      %v638 = vld [vmem:[%s635 + $0x10] sm:$0xff]
      %v639 = vld [vmem:[%s635 + $0x18] sm:$0xff]
      %v640 = vld [vmem:[%s635 + $0x20] sm:$0xff]
      %v641 = vld [vmem:[%s635 + $0x28] sm:$0xff]
      %v642 = vld [vmem:[%s635 + $0x30] sm:$0xff]
      %v643 = vld [vmem:[%s635 + $0x38] sm:$0xff]
      %v644 = vld [vmem:[%s635 + $0x40] sm:$0xff]
      %v645 = vld [vmem:[%s635 + $0x48] sm:$0xff]
      %v646 = vld [vmem:[%s635 + $0x50] sm:$0xff]
      %v647 = vld [vmem:[%s635 + $0x58] sm:$0xff]
      %v648 = vld [vmem:[%s635 + $0x60] sm:$0xff]
      %v649 = vld [vmem:[%s635 + $0x68] sm:$0xff]
      %v650 = vld [vmem:[%s635 + $0x70] sm:$0xff]
      %v651 = vld [vmem:[%s635 + $0x78] sm:$0xff]
      %652 = vmatprep.subr.mxu0 0.0
      %653 = vmatpush1.msra.mxu0 %v636
      %654 = vmatprep.subr.mxu0 0.0
      %655 = vmatpush1.msra.mxu0 %v637
      %656 = vmatprep.subr.mxu0 0.0
      %657 = vmatpush1.msra.mxu0 %v638
      %658 = vmatprep.subr.mxu0 0.0
      %659 = vmatpush1.msra.mxu0 %v639
      %660 = vmatprep.subr.mxu0 0.0
      %661 = vmatpush1.msra.mxu0 %v640
      %662 = vmatprep.subr.mxu0 0.0
      %663 = vmatpush1.msra.mxu0 %v641
      %664 = vmatprep.subr.mxu0 0.0
      %665 = vmatpush1.msra.mxu0 %v642
      %666 = vmatprep.subr.mxu0 0.0
      %667 = vmatpush1.msra.mxu0 %v643
      %668 = vmatprep.subr.mxu0 0.0
      %669 = vmatpush1.msra.mxu0 %v644
      %670 = vmatprep.subr.mxu0 0.0
      %671 = vmatpush1.msra.mxu0 %v645
      %672 = vmatprep.subr.mxu0 0.0
      %673 = vmatpush1.msra.mxu0 %v646
      %674 = vmatprep.subr.mxu0 0.0
      %675 = vmatpush1.msra.mxu0 %v647
      %676 = vmatprep.subr.mxu0 0.0
      %677 = vmatpush1.msra.mxu0 %v648
      %678 = vmatprep.subr.mxu0 0.0
      %679 = vmatpush1.msra.mxu0 %v649
      %680 = vmatprep.subr.mxu0 0.0
      %681 = vmatpush1.msra.mxu0 %v650
      %682 = vmatprep.subr.mxu0 0.0
      %683 = vmatpush1.msra.mxu0 %v651
      %684 = vmatprep.subr.mxu0 0.0
      %685 = vmatpush1.msra.mxu0 0.0
      %686 = vmatprep.subr.mxu0 0.0
      %687 = vmatpush1.msra.mxu0 0.0
      %688 = vmatprep.subr.mxu0 0.0
      %689 = vmatpush1.msra.mxu0 0.0
      %690 = vmatprep.subr.mxu0 0.0
      %691 = vmatpush1.msra.mxu0 0.0
      %692 = vmatprep.subr.mxu0 0.0
      %693 = vmatpush1.msra.mxu0 0.0
      %694 = vmatprep.subr.mxu0 0.0
      %695 = vmatpush1.msra.mxu0 0.0
      %696 = vmatprep.subr.mxu0 0.0
      %697 = vmatpush1.msra.mxu0 0.0
      %698 = vmatprep.subr.mxu0 0.0
      %699 = vmatpush1.msra.mxu0 0.0
      %700 = vmatprep.subr.mxu0 0.0
      %701 = vmatpush1.msra.mxu0 0.0
      %702 = vmatprep.subr.mxu0 0.0
      %703 = vmatpush1.msra.mxu0 0.0
      %704 = vmatprep.subr.mxu0 0.0
      %705 = vmatpush1.msra.mxu0 0.0
      %706 = vmatprep.subr.mxu0 0.0
      %707 = vmatpush1.msra.mxu0 0.0
      %708 = vmatprep.subr.mxu0 0.0
      %709 = vmatpush1.msra.mxu0 0.0
      %710 = vmatprep.subr.mxu0 0.0
      %711 = vmatpush1.msra.mxu0 0.0
      %712 = vmatprep.subr.mxu0 0.0
      %713 = vmatpush1.msra.mxu0 0.0
      %714 = vmatprep.subr.mxu0 0.0
      %715 = vmatpush1.msra.mxu0 0.0
      %716 = vmatprep.mubr.f32.mxu0 0.0
      %717 = vmatmul.mubr.f32.gmra.mrb[0].mxu0 %v633
      %v718 = vpop.f32.mrb[0].mxu0
      %v719 = vadd.f32 0.0, %v718
      %v720 = vpop.f32.mrb[0].mxu0
      %721 = vmatprep.mubr.f32.mxu0 0.0
      %722 = vmatmul.mubr.f32.gmra.mrb[0].mxu0 %v634
      %v723 = vpop.f32.mrb[0].mxu0
      %v724 = vadd.f32 0.0, %v723
      %v725 = vpop.f32.mrb[0].mxu0
      %726 = vdwg.mxu0
      %v727 = vld [vmem:[#allocation3 + $0x2] sm:$0xff]
      %v728 = vld [vmem:[#allocation3 + $0xa] sm:$0xff]
      %s729 = scalar_lea.vmem %s3, 256
      %v730 = vld [vmem:[%s729] sm:$0xff]
      %v731 = vld [vmem:[%s729 + $0x8] sm:$0xff]
      %v732 = vld [vmem:[%s729 + $0x10] sm:$0xff]
      %v733 = vld [vmem:[%s729 + $0x18] sm:$0xff]
      %v734 = vld [vmem:[%s729 + $0x20] sm:$0xff]
      %v735 = vld [vmem:[%s729 + $0x28] sm:$0xff]
      %v736 = vld [vmem:[%s729 + $0x30] sm:$0xff]
      %v737 = vld [vmem:[%s729 + $0x38] sm:$0xff]
      %v738 = vld [vmem:[%s729 + $0x40] sm:$0xff]
      %v739 = vld [vmem:[%s729 + $0x48] sm:$0xff]
      %v740 = vld [vmem:[%s729 + $0x50] sm:$0xff]
      %v741 = vld [vmem:[%s729 + $0x58] sm:$0xff]
      %v742 = vld [vmem:[%s729 + $0x60] sm:$0xff]
      %v743 = vld [vmem:[%s729 + $0x68] sm:$0xff]
      %v744 = vld [vmem:[%s729 + $0x70] sm:$0xff]
      %v745 = vld [vmem:[%s729 + $0x78] sm:$0xff]
      %746 = vmatprep.subr.mxu0 0.0
      %747 = vmatpush1.msra.mxu0 %v617
      %748 = vmatprep.subr.mxu0 0.0
      %749 = vmatpush1.msra.mxu0 %v618
      %750 = vmatprep.subr.mxu0 0.0
      %751 = vmatpush1.msra.mxu0 %v619
      %752 = vmatprep.subr.mxu0 0.0
      %753 = vmatpush1.msra.mxu0 %v620
      %754 = vmatprep.subr.mxu0 0.0
      %755 = vmatpush1.msra.mxu0 %v621
      %756 = vmatprep.subr.mxu0 0.0
      %757 = vmatpush1.msra.mxu0 %v622
      %758 = vmatprep.subr.mxu0 0.0
      %759 = vmatpush1.msra.mxu0 %v623
      %760 = vmatprep.subr.mxu0 0.0
      %761 = vmatpush1.msra.mxu0 %v624
      %762 = vmatprep.subr.mxu0 0.0
      %763 = vmatpush1.msra.mxu0 %v625
      %764 = vmatprep.subr.mxu0 0.0
      %765 = vmatpush1.msra.mxu0 %v626
      %766 = vmatprep.subr.mxu0 0.0
      %767 = vmatpush1.msra.mxu0 %v627
      %768 = vmatprep.subr.mxu0 0.0
      %769 = vmatpush1.msra.mxu0 %v628
      %770 = vmatprep.subr.mxu0 0.0
      %771 = vmatpush1.msra.mxu0 %v629
      %772 = vmatprep.subr.mxu0 0.0
      %773 = vmatpush1.msra.mxu0 %v630
      %774 = vmatprep.subr.mxu0 0.0
      %775 = vmatpush1.msra.mxu0 %v631
      %776 = vmatprep.subr.mxu0 0.0
      %777 = vmatpush1.msra.mxu0 %v632
      %778 = vmatprep.subr.mxu0 0.0
      %779 = vmatpush1.msra.mxu0 0.0
      %780 = vmatprep.subr.mxu0 0.0
      %781 = vmatpush1.msra.mxu0 0.0
      %782 = vmatprep.subr.mxu0 0.0
      %783 = vmatpush1.msra.mxu0 0.0
      %784 = vmatprep.subr.mxu0 0.0
      %785 = vmatpush1.msra.mxu0 0.0
      %786 = vmatprep.subr.mxu0 0.0
      %787 = vmatpush1.msra.mxu0 0.0
      %788 = vmatprep.subr.mxu0 0.0
      %789 = vmatpush1.msra.mxu0 0.0
      %790 = vmatprep.subr.mxu0 0.0
      %791 = vmatpush1.msra.mxu0 0.0
      %792 = vmatprep.subr.mxu0 0.0
      %793 = vmatpush1.msra.mxu0 0.0
      %794 = vmatprep.subr.mxu0 0.0
      %795 = vmatpush1.msra.mxu0 0.0
      %796 = vmatprep.subr.mxu0 0.0
      %797 = vmatpush1.msra.mxu0 0.0
      %798 = vmatprep.subr.mxu0 0.0
      %799 = vmatpush1.msra.mxu0 0.0
      %800 = vmatprep.subr.mxu0 0.0
      %801 = vmatpush1.msra.mxu0 0.0
      %802 = vmatprep.subr.mxu0 0.0
      %803 = vmatpush1.msra.mxu0 0.0
      %804 = vmatprep.subr.mxu0 0.0
      %805 = vmatpush1.msra.mxu0 0.0
      %806 = vmatprep.subr.mxu0 0.0
      %807 = vmatpush1.msra.mxu0 0.0
      %808 = vmatprep.subr.mxu0 0.0
      %809 = vmatpush1.msra.mxu0 0.0
      %810 = vmatprep.mubr.f32.mxu0 0.0
      %811 = vmatmul.mubr.f32.gmra.mrb[0].mxu0 %v615
      %v812 = vpop.f32.mrb[0].mxu0
      %v813 = vadd.f32 %v719, %v812
      %v814 = vpop.f32.mrb[0].mxu0
      %815 = vmatprep.mubr.f32.mxu0 0.0
      %816 = vmatmul.mubr.f32.gmra.mrb[0].mxu0 %v616
      %v817 = vpop.f32.mrb[0].mxu0
      %v818 = vadd.f32 %v724, %v817
      %v819 = vpop.f32.mrb[0].mxu0
      %820 = vdwg.mxu0
      %v821 = vld [vmem:[%s4] sm:$0x1]
      %v823 = vlaneseq
      %v824 = vshrl.u32 %v823, 7
      %v825 = vsub.s32 0, %v824
      %v826 = vrot.slane %v821, %v825
      %828 = vmatprep.subr.mxu0 0.0
      %829 = vmatpush1.msra.mxu0 %v730
      %830 = vmatprep.subr.mxu0 0.0
      %831 = vmatpush1.msra.mxu0 %v731
      %832 = vmatprep.subr.mxu0 0.0
      %833 = vmatpush1.msra.mxu0 %v732
      %834 = vmatprep.subr.mxu0 0.0
      %835 = vmatpush1.msra.mxu0 %v733
      %836 = vmatprep.subr.mxu0 0.0
      %837 = vmatpush1.msra.mxu0 %v734
      %838 = vmatprep.subr.mxu0 0.0
      %839 = vmatpush1.msra.mxu0 %v735
      %840 = vmatprep.subr.mxu0 0.0
      %841 = vmatpush1.msra.mxu0 %v736
      %842 = vmatprep.subr.mxu0 0.0
      %843 = vmatpush1.msra.mxu0 %v737
      %844 = vmatprep.subr.mxu0 0.0
      %845 = vmatpush1.msra.mxu0 %v738
      %846 = vmatprep.subr.mxu0 0.0
      %847 = vmatpush1.msra.mxu0 %v739
      %848 = vmatprep.subr.mxu0 0.0
      %849 = vmatpush1.msra.mxu0 %v740
      %850 = vmatprep.subr.mxu0 0.0
      %851 = vmatpush1.msra.mxu0 %v741
      %852 = vmatprep.subr.mxu0 0.0
      %853 = vmatpush1.msra.mxu0 %v742
      %854 = vmatprep.subr.mxu0 0.0
      %855 = vmatpush1.msra.mxu0 %v743
      %856 = vmatprep.subr.mxu0 0.0
      %857 = vmatpush1.msra.mxu0 %v744
      %858 = vmatprep.subr.mxu0 0.0
      %859 = vmatpush1.msra.mxu0 %v745
      %860 = vmatprep.subr.mxu0 0.0
      %861 = vmatpush1.msra.mxu0 0.0
      %862 = vmatprep.subr.mxu0 0.0
      %863 = vmatpush1.msra.mxu0 0.0
      %864 = vmatprep.subr.mxu0 0.0
      %865 = vmatpush1.msra.mxu0 0.0
      %866 = vmatprep.subr.mxu0 0.0
      %867 = vmatpush1.msra.mxu0 0.0
      %868 = vmatprep.subr.mxu0 0.0
      %869 = vmatpush1.msra.mxu0 0.0
      %870 = vmatprep.subr.mxu0 0.0
      %871 = vmatpush1.msra.mxu0 0.0
      %872 = vmatprep.subr.mxu0 0.0
      %873 = vmatpush1.msra.mxu0 0.0
      %874 = vmatprep.subr.mxu0 0.0
      %875 = vmatpush1.msra.mxu0 0.0
      %876 = vmatprep.subr.mxu0 0.0
      %877 = vmatpush1.msra.mxu0 0.0
      %878 = vmatprep.subr.mxu0 0.0
      %879 = vmatpush1.msra.mxu0 0.0
      %880 = vmatprep.subr.mxu0 0.0
      %881 = vmatpush1.msra.mxu0 0.0
      %882 = vmatprep.subr.mxu0 0.0
      %883 = vmatpush1.msra.mxu0 0.0
      %884 = vmatprep.subr.mxu0 0.0
      %885 = vmatpush1.msra.mxu0 0.0
      %886 = vmatprep.subr.mxu0 0.0
      %887 = vmatpush1.msra.mxu0 0.0
      %888 = vmatprep.subr.mxu0 0.0
      %889 = vmatpush1.msra.mxu0 0.0
      %890 = vmatprep.subr.mxu0 0.0
      %891 = vmatpush1.msra.mxu0 0.0
      %892 = vmatprep.mubr.f32.mxu0 0.0
      %893 = vmatmul.mubr.f32.gmra.mrb[0].mxu0 %v727
      %v894 = vpop.f32.mrb[0].mxu0
      %v895 = vadd.f32 %v826, %v894
      %v896 = vpop.f32.mrb[0].mxu0
      %897 = vmatprep.mubr.f32.mxu0 0.0
      %898 = vmatmul.mubr.f32.gmra.mrb[0].mxu0 %v728
      %v899 = vpop.f32.mrb[0].mxu0
      %v900 = vadd.f32 %v826, %v899
      %v901 = vpop.f32.mrb[0].mxu0
      %902 = vdwg.mxu0
      %v903 = vadd.f32 %v813, %v895
      %v904 = vadd.f32 %v818, %v900
      %v905 = vmax.f32 %v903, 0.0
      %v906 = vmax.f32 %v904, 0.0
      %907 = vst [vmem:[%s312] sm:$0xff] %v905
      %908 = vst [vmem:[%s312 + $0x8] sm:$0xff] %v906
      %911 = vrot.lane.b32.xlu0 %v905, 120
      %v912 = vpop.permute.xlu0 %911
      %913 = vrot.lane.b32.xlu0 %v906, 120
      %v914 = vpop.permute.xlu0 %913
      %v917 = vmax.f32 %v905, %v912
      %v918 = vmax.f32 %v906, %v914
      %vm921 = vcmask 1046528
      %v922 = vrot.slane %v917, 1
      %v923 = vrot.slane %v918, 1
      %v924 = vsel %vm921, %v922, %v923
      %v927 = vmax.f32 %v917, %v924
      %v928 = vmax.f32 %v918, %v923
      %v929 = vld [vmem:[%s5] sm:$0xf]
      %vm930 = vcmask 121856
      %v932 = vsel %vm930, %v929, 0
      %v935 = vsel %vm921, %v928, 0
      %937 = vmatprep.subr.mxu0 0.0
      %938 = vmatpush1.msra.mxu0 %v927
      %939 = vmatprep.subr.mxu0 0.0
      %940 = vmatpush1.msra.mxu0 %v935
      %941 = vmatprep.subr.mxu0 0.0
      %942 = vmatpush1.msra.mxu0 0.0
      %943 = vmatprep.subr.mxu0 0.0
      %944 = vmatpush1.msra.mxu0 0.0
      %945 = vmatprep.subr.mxu0 0.0
      %946 = vmatpush1.msra.mxu0 0.0
      %947 = vmatprep.subr.mxu0 0.0
      %948 = vmatpush1.msra.mxu0 0.0
      %949 = vmatprep.subr.mxu0 0.0
      %950 = vmatpush1.msra.mxu0 0.0
      %951 = vmatprep.subr.mxu0 0.0
      %952 = vmatpush1.msra.mxu0 0.0
      %953 = vmatprep.subr.mxu0 0.0
      %954 = vmatpush1.msra.mxu0 0.0
      %955 = vmatprep.subr.mxu0 0.0
      %956 = vmatpush1.msra.mxu0 0.0
      %957 = vmatprep.subr.mxu0 0.0
      %958 = vmatpush1.msra.mxu0 0.0
      %959 = vmatprep.subr.mxu0 0.0
      %960 = vmatpush1.msra.mxu0 0.0
      %961 = vmatprep.subr.mxu0 0.0
      %962 = vmatpush1.msra.mxu0 0.0
      %963 = vmatprep.subr.mxu0 0.0
      %964 = vmatpush1.msra.mxu0 0.0
      %965 = vmatprep.subr.mxu0 0.0
      %966 = vmatpush1.msra.mxu0 0.0
      %967 = vmatprep.subr.mxu0 0.0
      %968 = vmatpush1.msra.mxu0 0.0
      %969 = vmatprep.subr.mxu0 0.0
      %970 = vmatpush1.msra.mxu0 0.0
      %971 = vmatprep.subr.mxu0 0.0
      %972 = vmatpush1.msra.mxu0 0.0
      %973 = vmatprep.subr.mxu0 0.0
      %974 = vmatpush1.msra.mxu0 0.0
      %975 = vmatprep.subr.mxu0 0.0
      %976 = vmatpush1.msra.mxu0 0.0
      %977 = vmatprep.subr.mxu0 0.0
      %978 = vmatpush1.msra.mxu0 0.0
      %979 = vmatprep.subr.mxu0 0.0
      %980 = vmatpush1.msra.mxu0 0.0
      %981 = vmatprep.subr.mxu0 0.0
      %982 = vmatpush1.msra.mxu0 0.0
      %983 = vmatprep.subr.mxu0 0.0
      %984 = vmatpush1.msra.mxu0 0.0
      %985 = vmatprep.subr.mxu0 0.0
      %986 = vmatpush1.msra.mxu0 0.0
      %987 = vmatprep.subr.mxu0 0.0
      %988 = vmatpush1.msra.mxu0 0.0
      %989 = vmatprep.subr.mxu0 0.0
      %990 = vmatpush1.msra.mxu0 0.0
      %991 = vmatprep.subr.mxu0 0.0
      %992 = vmatpush1.msra.mxu0 0.0
      %993 = vmatprep.subr.mxu0 0.0
      %994 = vmatpush1.msra.mxu0 0.0
      %995 = vmatprep.subr.mxu0 0.0
      %996 = vmatpush1.msra.mxu0 0.0
      %997 = vmatprep.subr.mxu0 0.0
      %998 = vmatpush1.msra.mxu0 0.0
      %999 = vmatprep.subr.mxu0 0.0
      %1000 = vmatpush1.msra.mxu0 0.0
      %1001 = vmatprep.mubr.f32.mxu0 0.0
      %1002 = vmatmul.mubr.f32.gmra.mrb[0].mxu0 %v932
      %v1003 = vpop.f32.mrb[0].mxu0
      %v1004 = vadd.f32 0.0, %v1003
      %v1005 = vpop.f32.mrb[0].mxu0
      %1006 = vdwg.mxu0
      %v1007 = vld [vmem:[%s6] sm:$0xff]
      %v1008 = vld [vmem:[%s6 + $0x8] sm:$0xff]
      %v1009 = vld [vmem:[%s6 + $0x10] sm:$0xff]
      %v1010 = vld [vmem:[%s6 + $0x18] sm:$0xff]
      %v1011 = vld [vmem:[%s6 + $0x20] sm:$0xff]
      %v1012 = vld [vmem:[%s6 + $0x28] sm:$0xff]
      %v1013 = vld [vmem:[%s6 + $0x30] sm:$0xff]
      %v1014 = vld [vmem:[%s6 + $0x38] sm:$0xff]
      %v1015 = vld [vmem:[%s6 + $0x40] sm:$0xff]
      %v1016 = vld [vmem:[%s6 + $0x48] sm:$0xff]
      %v1017 = vld [vmem:[%s6 + $0x50] sm:$0xff]
      %v1018 = vld [vmem:[%s6 + $0x58] sm:$0xff]
      %v1019 = vld [vmem:[%s6 + $0x60] sm:$0xff]
      %v1020 = vld [vmem:[%s6 + $0x68] sm:$0xff]
      %v1021 = vld [vmem:[%s6 + $0x70] sm:$0xff]
      %s1022 = scalar_lea.vmem %s5, 4
      %v1023 = vld [vmem:[%s1022] sm:$0xf]
      %v1025 = vsel %vm930, %v1023, 0
      %1027 = vmatprep.subr.mxu0 0.0
      %1028 = vmatpush1.msra.mxu0 %v927
      %1029 = vmatprep.subr.mxu0 0.0
      %1030 = vmatpush1.msra.mxu0 %v935
      %1031 = vmatprep.subr.mxu0 0.0
      %1032 = vmatpush1.msra.mxu0 0.0
      %1033 = vmatprep.subr.mxu0 0.0
      %1034 = vmatpush1.msra.mxu0 0.0
      %1035 = vmatprep.subr.mxu0 0.0
      %1036 = vmatpush1.msra.mxu0 0.0
      %1037 = vmatprep.subr.mxu0 0.0
      %1038 = vmatpush1.msra.mxu0 0.0
      %1039 = vmatprep.subr.mxu0 0.0
      %1040 = vmatpush1.msra.mxu0 0.0
      %1041 = vmatprep.subr.mxu0 0.0
      %1042 = vmatpush1.msra.mxu0 0.0
      %1043 = vmatprep.subr.mxu0 0.0
      %1044 = vmatpush1.msra.mxu0 0.0
      %1045 = vmatprep.subr.mxu0 0.0
      %1046 = vmatpush1.msra.mxu0 0.0
      %1047 = vmatprep.subr.mxu0 0.0
      %1048 = vmatpush1.msra.mxu0 0.0
      %1049 = vmatprep.subr.mxu0 0.0
      %1050 = vmatpush1.msra.mxu0 0.0
      %1051 = vmatprep.subr.mxu0 0.0
      %1052 = vmatpush1.msra.mxu0 0.0
      %1053 = vmatprep.subr.mxu0 0.0
      %1054 = vmatpush1.msra.mxu0 0.0
      %1055 = vmatprep.subr.mxu0 0.0
      %1056 = vmatpush1.msra.mxu0 0.0
      %1057 = vmatprep.subr.mxu0 0.0
      %1058 = vmatpush1.msra.mxu0 0.0
      %1059 = vmatprep.subr.mxu0 0.0
      %1060 = vmatpush1.msra.mxu0 0.0
      %1061 = vmatprep.subr.mxu0 0.0
      %1062 = vmatpush1.msra.mxu0 0.0
      %1063 = vmatprep.subr.mxu0 0.0
      %1064 = vmatpush1.msra.mxu0 0.0
      %1065 = vmatprep.subr.mxu0 0.0
      %1066 = vmatpush1.msra.mxu0 0.0
      %1067 = vmatprep.subr.mxu0 0.0
      %1068 = vmatpush1.msra.mxu0 0.0
      %1069 = vmatprep.subr.mxu0 0.0
      %1070 = vmatpush1.msra.mxu0 0.0
      %1071 = vmatprep.subr.mxu0 0.0
      %1072 = vmatpush1.msra.mxu0 0.0
      %1073 = vmatprep.subr.mxu0 0.0
      %1074 = vmatpush1.msra.mxu0 0.0
      %1075 = vmatprep.subr.mxu0 0.0
      %1076 = vmatpush1.msra.mxu0 0.0
      %1077 = vmatprep.subr.mxu0 0.0
      %1078 = vmatpush1.msra.mxu0 0.0
      %1079 = vmatprep.subr.mxu0 0.0
      %1080 = vmatpush1.msra.mxu0 0.0
      %1081 = vmatprep.subr.mxu0 0.0
      %1082 = vmatpush1.msra.mxu0 0.0
      %1083 = vmatprep.subr.mxu0 0.0
      %1084 = vmatpush1.msra.mxu0 0.0
      %1085 = vmatprep.subr.mxu0 0.0
      %1086 = vmatpush1.msra.mxu0 0.0
      %1087 = vmatprep.subr.mxu0 0.0
      %1088 = vmatpush1.msra.mxu0 0.0
      %1089 = vmatprep.subr.mxu0 0.0
      %1090 = vmatpush1.msra.mxu0 0.0
      %1091 = vmatprep.mubr.f32.mxu0 0.0
      %1092 = vmatmul.mubr.f32.gmra.mrb[0].mxu0 %v1025
      %v1093 = vpop.f32.mrb[0].mxu0
      %v1094 = vadd.f32 0.0, %v1093
      %v1095 = vpop.f32.mrb[0].mxu0
      %1096 = vdwg.mxu0
      %s1097 = scalar_lea.vmem %s6, 120
      %v1098 = vld [vmem:[%s1097] sm:$0xff]
      %v1099 = vld [vmem:[%s1097 + $0x8] sm:$0xff]
      %v1100 = vld [vmem:[%s1097 + $0x10] sm:$0xff]
      %v1101 = vld [vmem:[%s1097 + $0x18] sm:$0xff]
      %v1102 = vld [vmem:[%s1097 + $0x20] sm:$0xff]
      %v1103 = vld [vmem:[%s1097 + $0x28] sm:$0xff]
      %v1104 = vld [vmem:[%s1097 + $0x30] sm:$0xff]
      %v1105 = vld [vmem:[%s1097 + $0x38] sm:$0xff]
      %v1106 = vld [vmem:[%s1097 + $0x40] sm:$0xff]
      %v1107 = vld [vmem:[%s1097 + $0x48] sm:$0xff]
      %v1108 = vld [vmem:[%s1097 + $0x50] sm:$0xff]
      %v1109 = vld [vmem:[%s1097 + $0x58] sm:$0xff]
      %v1110 = vld [vmem:[%s1097 + $0x60] sm:$0xff]
      %v1111 = vld [vmem:[%s1097 + $0x68] sm:$0xff]
      %v1112 = vld [vmem:[%s1097 + $0x70] sm:$0xff]
      %vm1113 = vcmask 982016
      %v1115 = vsel %vm1113, %v1094, 0
      %1117 = vmatprep.subr.mxu0 0.0
      %1118 = vmatpush1.msra.mxu0 %v1098
      %1119 = vmatprep.subr.mxu0 0.0
      %1120 = vmatpush1.msra.mxu0 %v1099
      %1121 = vmatprep.subr.mxu0 0.0
      %1122 = vmatpush1.msra.mxu0 %v1100
      %1123 = vmatprep.subr.mxu0 0.0
      %1124 = vmatpush1.msra.mxu0 %v1101
      %1125 = vmatprep.subr.mxu0 0.0
      %1126 = vmatpush1.msra.mxu0 %v1102
      %1127 = vmatprep.subr.mxu0 0.0
      %1128 = vmatpush1.msra.mxu0 %v1103
      %1129 = vmatprep.subr.mxu0 0.0
      %1130 = vmatpush1.msra.mxu0 %v1104
      %1131 = vmatprep.subr.mxu0 0.0
      %1132 = vmatpush1.msra.mxu0 %v1105
      %1133 = vmatprep.subr.mxu0 0.0
      %1134 = vmatpush1.msra.mxu0 %v1106
      %1135 = vmatprep.subr.mxu0 0.0
      %1136 = vmatpush1.msra.mxu0 %v1107
      %1137 = vmatprep.subr.mxu0 0.0
      %1138 = vmatpush1.msra.mxu0 %v1108
      %1139 = vmatprep.subr.mxu0 0.0
      %1140 = vmatpush1.msra.mxu0 %v1109
      %1141 = vmatprep.subr.mxu0 0.0
      %1142 = vmatpush1.msra.mxu0 %v1110
      %1143 = vmatprep.subr.mxu0 0.0
      %1144 = vmatpush1.msra.mxu0 %v1111
      %1145 = vmatprep.subr.mxu0 0.0
      %1146 = vmatpush1.msra.mxu0 %v1112
      %1147 = vmatprep.subr.mxu0 0.0
      %1148 = vmatpush1.msra.mxu0 0.0
      %1149 = vmatprep.subr.mxu0 0.0
      %1150 = vmatpush1.msra.mxu0 0.0
      %1151 = vmatprep.subr.mxu0 0.0
      %1152 = vmatpush1.msra.mxu0 0.0
      %1153 = vmatprep.subr.mxu0 0.0
      %1154 = vmatpush1.msra.mxu0 0.0
      %1155 = vmatprep.subr.mxu0 0.0
      %1156 = vmatpush1.msra.mxu0 0.0
      %1157 = vmatprep.subr.mxu0 0.0
      %1158 = vmatpush1.msra.mxu0 0.0
      %1159 = vmatprep.subr.mxu0 0.0
      %1160 = vmatpush1.msra.mxu0 0.0
      %1161 = vmatprep.subr.mxu0 0.0
      %1162 = vmatpush1.msra.mxu0 0.0
      %1163 = vmatprep.subr.mxu0 0.0
      %1164 = vmatpush1.msra.mxu0 0.0
      %1165 = vmatprep.subr.mxu0 0.0
      %1166 = vmatpush1.msra.mxu0 0.0
      %1167 = vmatprep.subr.mxu0 0.0
      %1168 = vmatpush1.msra.mxu0 0.0
      %1169 = vmatprep.subr.mxu0 0.0
      %1170 = vmatpush1.msra.mxu0 0.0
      %1171 = vmatprep.subr.mxu0 0.0
      %1172 = vmatpush1.msra.mxu0 0.0
      %1173 = vmatprep.subr.mxu0 0.0
      %1174 = vmatpush1.msra.mxu0 0.0
      %1175 = vmatprep.subr.mxu0 0.0
      %1176 = vmatpush1.msra.mxu0 0.0
      %1177 = vmatprep.subr.mxu0 0.0
      %1178 = vmatpush1.msra.mxu0 0.0
      %1179 = vmatprep.subr.mxu0 0.0
      %1180 = vmatpush1.msra.mxu0 0.0
      %1181 = vmatprep.mubr.f32.mxu0 0.0
      %1182 = vmatmul.mubr.f32.gmra.mrb[0].mxu0 %v1115
      %v1183 = vpop.f32.mrb[0].mxu0
      %v1184 = vadd.f32 0.0, %v1183
      %v1185 = vpop.f32.mrb[0].mxu0
      %1186 = vdwg.mxu0
      %v1188 = vsel %vm1113, %v1004, 0
      %1190 = vmatprep.subr.mxu0 0.0
      %1191 = vmatpush1.msra.mxu0 %v1007
      %1192 = vmatprep.subr.mxu0 0.0
      %1193 = vmatpush1.msra.mxu0 %v1008
      %1194 = vmatprep.subr.mxu0 0.0
      %1195 = vmatpush1.msra.mxu0 %v1009
      %1196 = vmatprep.subr.mxu0 0.0
      %1197 = vmatpush1.msra.mxu0 %v1010
      %1198 = vmatprep.subr.mxu0 0.0
      %1199 = vmatpush1.msra.mxu0 %v1011
      %1200 = vmatprep.subr.mxu0 0.0
      %1201 = vmatpush1.msra.mxu0 %v1012
      %1202 = vmatprep.subr.mxu0 0.0
      %1203 = vmatpush1.msra.mxu0 %v1013
      %1204 = vmatprep.subr.mxu0 0.0
      %1205 = vmatpush1.msra.mxu0 %v1014
      %1206 = vmatprep.subr.mxu0 0.0
      %1207 = vmatpush1.msra.mxu0 %v1015
      %1208 = vmatprep.subr.mxu0 0.0
      %1209 = vmatpush1.msra.mxu0 %v1016
      %1210 = vmatprep.subr.mxu0 0.0
      %1211 = vmatpush1.msra.mxu0 %v1017
      %1212 = vmatprep.subr.mxu0 0.0
      %1213 = vmatpush1.msra.mxu0 %v1018
      %1214 = vmatprep.subr.mxu0 0.0
      %1215 = vmatpush1.msra.mxu0 %v1019
      %1216 = vmatprep.subr.mxu0 0.0
      %1217 = vmatpush1.msra.mxu0 %v1020
      %1218 = vmatprep.subr.mxu0 0.0
      %1219 = vmatpush1.msra.mxu0 %v1021
      %1220 = vmatprep.subr.mxu0 0.0
      %1221 = vmatpush1.msra.mxu0 0.0
      %1222 = vmatprep.subr.mxu0 0.0
      %1223 = vmatpush1.msra.mxu0 0.0
      %1224 = vmatprep.subr.mxu0 0.0
      %1225 = vmatpush1.msra.mxu0 0.0
      %1226 = vmatprep.subr.mxu0 0.0
      %1227 = vmatpush1.msra.mxu0 0.0
      %1228 = vmatprep.subr.mxu0 0.0
      %1229 = vmatpush1.msra.mxu0 0.0
      %1230 = vmatprep.subr.mxu0 0.0
      %1231 = vmatpush1.msra.mxu0 0.0
      %1232 = vmatprep.subr.mxu0 0.0
      %1233 = vmatpush1.msra.mxu0 0.0
      %1234 = vmatprep.subr.mxu0 0.0
      %1235 = vmatpush1.msra.mxu0 0.0
      %1236 = vmatprep.subr.mxu0 0.0
      %1237 = vmatpush1.msra.mxu0 0.0
      %1238 = vmatprep.subr.mxu0 0.0
      %1239 = vmatpush1.msra.mxu0 0.0
      %1240 = vmatprep.subr.mxu0 0.0
      %1241 = vmatpush1.msra.mxu0 0.0
      %1242 = vmatprep.subr.mxu0 0.0
      %1243 = vmatpush1.msra.mxu0 0.0
      %1244 = vmatprep.subr.mxu0 0.0
      %1245 = vmatpush1.msra.mxu0 0.0
      %1246 = vmatprep.subr.mxu0 0.0
      %1247 = vmatpush1.msra.mxu0 0.0
      %1248 = vmatprep.subr.mxu0 0.0
      %1249 = vmatpush1.msra.mxu0 0.0
      %1250 = vmatprep.subr.mxu0 0.0
      %1251 = vmatpush1.msra.mxu0 0.0
      %1252 = vmatprep.subr.mxu0 0.0
      %1253 = vmatpush1.msra.mxu0 0.0
      %1254 = vmatprep.mubr.f32.mxu0 0.0
      %1255 = vmatmul.mubr.f32.gmra.mrb[0].mxu0 %v1188
      %v1256 = vpop.f32.mrb[0].mxu0
      %v1257 = vadd.f32 %v1184, %v1256
      %v1258 = vpop.f32.mrb[0].mxu0
      %1259 = vdwg.mxu0
      %1260 = vst [vmem:[%s316] sm:$0xf] %v1257
      %p1261 = scmp.lt.s32.totalorder %s20, 1
      %s1262 = scalar_select %p1261, %s20, 1
      %s1263 = smul.addr %s1262, 2
      %s1264 = smul.addr %s1263, 8
      %s1265 = scalar_lea.vmem %s7, %s1264
      %p1266 = scmp.lt.s32.totalorder %s20, 1
      %s1267 = scalar_select %p1266, %s20, 1
      %s1268 = smul.addr %s1267, 4
      %s1269 = scalar_lea.vmem %s8, %s1268
      // Predicated region
      $region49: #{downsample_forward.1} parent=47 // pred_check
        %p1270 = pneg %p190
      $region50: #{downsample_forward.1} parent=47 // pred_check_branch
        %1272 = sbr.rel (%p1270) target = $region52
      $region51: #{downsample_forward.1} parent=47 // pred_region
        _
      $region52: #{downsample_forward.1} parent=47 // pred_fallthru
        _
      // Predicated region
      $region53: #{downsample_forward.1} parent=47 // pred_check
        %p1273 = pneg %p216
      $region54: #{downsample_forward.1} parent=47 // pred_check_branch
        %1275 = sbr.rel (%p1273) target = $region56
      $region55: #{downsample_forward.1} parent=47 // pred_region
        _
      $region56: #{downsample_forward.1} parent=47 // pred_fallthru
        _
    $region48: #{downsample_forward.1} parent=5 // pred_fallthru
      _
    %p1276 = scmp.le.s32.totalorder 2, %s15
    // Predicated region
    $region57: #{downsample_forward.1} parent=5 // pred_check
      %p1277 = pneg %p1276
    $region58: #{downsample_forward.1} parent=5 // pred_check_branch
      %1279 = sbr.rel (%p1277) target = $region60
    $region59: #{downsample_forward.1} parent=5 // pred_region
      %s1280 = ssub.s32 %s15, 2
      // Predicated region
      $region61: #{downsample_forward.1} parent=59 // pred_check
        %p1281 = pneg %p196
      $region62: #{downsample_forward.1} parent=59 // pred_check_branch
        %1283 = sbr.rel (%p1281) target = $region64
      $region63: #{downsample_forward.1} parent=59 // pred_region
        %p1284 = scmp.lt.s32.totalorder %s21, 1
        %s1285 = scalar_select %p1284, %s21, 1
        %s1286 = smul.addr %s1285, 2
        %s1287 = smul.addr %s1286, 8
        %s1288 = scalar_lea.vmem %s7, %s1287
      $region64: #{downsample_forward.1} parent=59 // pred_fallthru
        _
      // Predicated region
      $region65: #{downsample_forward.1} parent=59 // pred_check
        %p1289 = pneg %p222
      $region66: #{downsample_forward.1} parent=59 // pred_check_branch
        %1291 = sbr.rel (%p1289) target = $region68
      $region67: #{downsample_forward.1} parent=59 // pred_region
        %p1292 = scmp.lt.s32.totalorder %s21, 1
        %s1293 = scalar_select %p1292, %s21, 1
        %s1294 = smul.addr %s1293, 4
        %s1295 = scalar_lea.vmem %s8, %s1294
      $region68: #{downsample_forward.1} parent=59 // pred_fallthru
        _
    $region60: #{downsample_forward.1} parent=5 // pred_fallthru
      _
  $region6: #{downsample_forward.1} parent=0 // loop_footer
    %s19 = sadd.s32 1, %s15
  $region7: #{downsample_forward.1} parent=0 // loop_footer_branch
    %14 = sbr.rel target = $region3
  $region8: #{downsample_forward.1} parent=0 // loop_exit
    _

</llo_original>
